<compile_context>
chip_gen: v7x
topology: tpu7x:2x2x1
jax: 0.10.0
libtpu: 0.0.40
codegen_flags: <defaults>
</compile_context>

<pallas_src>
import math

import jax
import jax.numpy as jnp
from jax.experimental import pallas as pl
from jax.experimental.pallas import tpu as pltpu


# ----------------------------------------------------------------------------
# Pallas kernel: fused 3-layer MLP (BN folded into weights/bias)
# ----------------------------------------------------------------------------
def _projector_kernel(x_ref, w1_ref, b1_ref, w2_ref, b2_ref, w3_ref, b3_ref, o_ref):
    cd = w1_ref.dtype                      # bf16 compute dtype
    # cast x fp32 -> bf16 in-kernel (VPU); avoids a separate wrapper HBM pass
    x = x_ref[...].astype(cd)
    # layer 1: Linear(D, P) with BN1 scale folded into w1 / shift into b1, + ReLU
    h = jnp.dot(x, w1_ref[...], preferred_element_type=jnp.float32)
    h = jnp.maximum(h + b1_ref[...], 0.0).astype(cd)
    # layer 2: Linear(P, P) with BN2 folded, + ReLU
    h = jnp.dot(h, w2_ref[...], preferred_element_type=jnp.float32)
    h = jnp.maximum(h + b2_ref[...], 0.0).astype(cd)
    # layer 3: plain Linear(P, P)
    out = jnp.dot(h, w3_ref[...], preferred_element_type=jnp.float32) + b3_ref[...]
    o_ref[...] = out.astype(o_ref.dtype)


def _round_up(v, m):
    return ((v + m - 1) // m) * m


def projector_apply(x, params, *, tm=2048, compute_dtype=jnp.bfloat16,
                    out_dtype=jnp.float32):
    """x: (M, D) fp32  ->  (M, P) out_dtype.  Whole MLP fused in one pallas_call."""
    M, D = x.shape
    P = params["w3"].shape[1]

    # Row tile: big enough to amortize per-step pipeline overhead, multiple of 8
    # sublanes, and capped so the grid has >= 2 steps (v7x megacore sharding).
    tm = _round_up(max(tm, 8), 8)
    tm_eff = max(8, min(tm, _round_up(pl.cdiv(M, 2), 8)))
    grid = (pl.cdiv(M, tm_eff),)           # ragged last block -> masked stores

    w1 = params["w1"].astype(compute_dtype)
    w2 = params["w2"].astype(compute_dtype)
    w3 = params["w3"].astype(compute_dtype)
    b1 = params["b1"].reshape(1, P).astype(jnp.float32)
    b2 = params["b2"].reshape(1, P).astype(jnp.float32)
    b3 = params["b3"].reshape(1, P).astype(jnp.float32)

    def full(shape):
        return pl.BlockSpec(shape, lambda i: (0, 0))

    flops = 2 * M * (D * P + 2 * P * P)
    bytes_accessed = (
        M * D * x.dtype.itemsize                                  # x (fp32 read)
        + (w1.size + w2.size + w3.size) * w1.dtype.itemsize       # weights (bf16)
        + (b1.size + b2.size + b3.size) * 4                       # biases
        + M * P * jnp.dtype(out_dtype).itemsize                   # output
    )

    out = pl.pallas_call(
        _projector_kernel,
        out_shape=jax.ShapeDtypeStruct((M, P), out_dtype),
        grid=grid,
        in_specs=[
            pl.BlockSpec((tm_eff, D), lambda i: (i, 0)),   # x row-tile (fp32)
            full((D, P)), full((1, P)),                    # w1', b1'
            full((P, P)), full((1, P)),                    # w2', b2'
            full((P, P)), full((1, P)),                    # w3,  b3
        ],
        out_specs=pl.BlockSpec((tm_eff, P), lambda i: (i, 0)),
        compiler_params=pltpu.CompilerParams(
            dimension_semantics=("parallel",),
            vmem_limit_bytes=48 * 1024 * 1024,
        ),
        cost_estimate=pl.CostEstimate(
            flops=flops, transcendentals=0, bytes_accessed=bytes_accessed),
    )(x, w1, b1, w2, b2, w3, b3)

    return out


# ----------------------------------------------------------------------------
# Deterministic parameter construction (synthetic, eval-mode BN folded)
# ----------------------------------------------------------------------------
def _linear_init(key, din, dout):
    kw, kb = jax.random.split(key)
    bound = 1.0 / math.sqrt(din)
    w = jax.random.uniform(kw, (din, dout), jnp.float32, -bound, bound)
    b = jax.random.uniform(kb, (dout,), jnp.float32, -bound, bound)
    return w, b


def _bn_fold(key, c, eps=1e-5):
    k1, k2, k3, k4 = jax.random.split(key, 4)
    gamma = 1.0 + 0.1 * jax.random.normal(k1, (c,), jnp.float32)
    beta = 0.1 * jax.random.normal(k2, (c,), jnp.float32)
    mean = 0.1 * jax.random.normal(k3, (c,), jnp.float32)
    var = 1.0 + 0.1 * jax.random.uniform(k4, (c,), jnp.float32)
    scale = gamma * jax.lax.rsqrt(var + eps)
    shift = beta - mean * scale
    return scale, shift


def init_projector_params(key, D, proj_dim=512):
    k = jax.random.split(key, 5)
    w1, b1 = _linear_init(k[0], D, proj_dim)
    s1, sh1 = _bn_fold(k[1], proj_dim)
    w2, b2 = _linear_init(k[2], proj_dim, proj_dim)
    s2, sh2 = _bn_fold(k[3], proj_dim)
    w3, b3 = _linear_init(k[4], proj_dim, proj_dim)
    # Fold eval-mode BN into the preceding Linear:
    #   bn(x @ w + b) = x @ (w * s) + (b * s + shift)
    return {
        "w1": w1 * s1[None, :], "b1": b1 * s1 + sh1,
        "w2": w2 * s2[None, :], "b2": b2 * s2 + sh2,
        "w3": w3, "b3": b3,
    }


# ----------------------------------------------------------------------------
# Pure-JAX reference (same bf16-in / fp32-accumulate numerics)
# ----------------------------------------------------------------------------
def projector_ref(x, params, compute_dtype=jnp.bfloat16):
    h = jnp.dot(x.astype(compute_dtype), params["w1"].astype(compute_dtype),
                preferred_element_type=jnp.float32)
    h = jnp.maximum(h + params["b1"][None, :], 0.0).astype(compute_dtype)
    h = jnp.dot(h, params["w2"].astype(compute_dtype),
                preferred_element_type=jnp.float32)
    h = jnp.maximum(h + params["b2"][None, :], 0.0).astype(compute_dtype)
    return jnp.dot(h, params["w3"].astype(compute_dtype),
                   preferred_element_type=jnp.float32) + params["b3"][None, :]


# ----------------------------------------------------------------------------
if __name__ == "__main__":
    key = jax.random.PRNGKey(0)
    kp, kx = jax.random.split(key)

    # Small shapes consistent with the module: x is (batch, D).
    # batch=20 deliberately exercises the ragged (non-divisible) last row-block.
    D, proj_dim, batch = 32, 512, 20
    params = init_projector_params(kp, D, proj_dim)
    x = jax.random.normal(kx, (batch, D), jnp.float32)

    fwd = jax.jit(lambda xx: projector_apply(xx, params))
    out = fwd(x)
    jax.block_until_ready(out)

    assert out.shape == (batch, proj_dim), out.shape
    assert bool(jnp.all(jnp.isfinite(out)))

    ref = projector_ref(x, params)
    max_err = float(jnp.max(jnp.abs(out - ref)))
    assert max_err < 5e-2, f"max abs err {max_err}"

    print("KERNEL_OK")
</pallas_src>

<mosaic_0001>
module attributes {stable_mosaic.version = 11 : i64} {
  func.func @_projector_kernel(%arg0: i32, %arg1: memref<16x32xf32, #tpu.memory_space<vmem>>, %arg2: memref<32x512xbf16, #tpu.memory_space<vmem>>, %arg3: memref<1x512xf32, #tpu.memory_space<vmem>>, %arg4: memref<512x512xbf16, #tpu.memory_space<vmem>>, %arg5: memref<1x512xf32, #tpu.memory_space<vmem>>, %arg6: memref<512x512xbf16, #tpu.memory_space<vmem>>, %arg7: memref<1x512xf32, #tpu.memory_space<vmem>>, %arg8: memref<16x512xf32, #tpu.memory_space<vmem>>) attributes {dimension_semantics = [#tpu.dimension_semantics<parallel>], iteration_bounds = array<i64: 2>, scalar_prefetch = 0 : i64, scratch_operands = 0 : i64, tpu.core_type = #tpu.core_type<tc>, window_params = [{transform_indices = @transform_0, window_bounds = array<i64: 16, 32>}, {pipeline_mode = #tpu.pipeline_mode<synchronous>, transform_indices = @transform_1, window_bounds = array<i64: 32, 512>}, {pipeline_mode = #tpu.pipeline_mode<synchronous>, transform_indices = @transform_2, window_bounds = array<i64: 1, 512>}, {pipeline_mode = #tpu.pipeline_mode<synchronous>, transform_indices = @transform_3, window_bounds = array<i64: 512, 512>}, {pipeline_mode = #tpu.pipeline_mode<synchronous>, transform_indices = @transform_4, window_bounds = array<i64: 1, 512>}, {pipeline_mode = #tpu.pipeline_mode<synchronous>, transform_indices = @transform_5, window_bounds = array<i64: 512, 512>}, {pipeline_mode = #tpu.pipeline_mode<synchronous>, transform_indices = @transform_6, window_bounds = array<i64: 1, 512>}, {transform_indices = @transform_7, window_bounds = array<i64: 16, 512>}]} {
    %c0 = arith.constant 0 : index
    %c0_0 = arith.constant 0 : index
    %0 = vector.load %arg1[%c0, %c0_0] : memref<16x32xf32, #tpu.memory_space<vmem>>, vector<16x32xf32>
    %1 = arith.truncf %0 : vector<16x32xf32> to vector<16x32xbf16>
    %c0_1 = arith.constant 0 : index
    %c0_2 = arith.constant 0 : index
    %2 = vector.load %arg2[%c0_1, %c0_2] : memref<32x512xbf16, #tpu.memory_space<vmem>>, vector<32x512xbf16>
    %cst = arith.constant dense<0.000000e+00> : vector<16x512xf32>
    %3 = tpu.matmul %1, %2, %cst {dimension_numbers = #tpu.dot_dimension_numbers<[1], [0], [0], [1], [0, 0, 1, 1], [], []>} : vector<16x32xbf16>, vector<32x512xbf16>, vector<16x512xf32> -> vector<16x512xf32>
    %c0_3 = arith.constant 0 : index
    %c0_4 = arith.constant 0 : index
    %4 = vector.load %arg3[%c0_3, %c0_4] : memref<1x512xf32, #tpu.memory_space<vmem>>, vector<1x512xf32>
    %5 = vector.broadcast %4 : vector<1x512xf32> to vector<16x512xf32>
    %6 = arith.addf %3, %5 : vector<16x512xf32>
    %cst_5 = arith.constant 0.000000e+00 : f32
    %7 = vector.broadcast %cst_5 : f32 to vector<16x512xf32>
    %8 = arith.maximumf %6, %7 : vector<16x512xf32>
    %9 = arith.truncf %8 : vector<16x512xf32> to vector<16x512xbf16>
    %c0_6 = arith.constant 0 : index
    %c0_7 = arith.constant 0 : index
    %10 = vector.load %arg4[%c0_6, %c0_7] : memref<512x512xbf16, #tpu.memory_space<vmem>>, vector<512x512xbf16>
    %cst_8 = arith.constant dense<0.000000e+00> : vector<16x512xf32>
    %11 = tpu.matmul %9, %10, %cst_8 {dimension_numbers = #tpu.dot_dimension_numbers<[1], [0], [0], [1], [0, 0, 1, 1], [], []>} : vector<16x512xbf16>, vector<512x512xbf16>, vector<16x512xf32> -> vector<16x512xf32>
    %c0_9 = arith.constant 0 : index
    %c0_10 = arith.constant 0 : index
    %12 = vector.load %arg5[%c0_9, %c0_10] : memref<1x512xf32, #tpu.memory_space<vmem>>, vector<1x512xf32>
    %13 = vector.broadcast %12 : vector<1x512xf32> to vector<16x512xf32>
    %14 = arith.addf %11, %13 : vector<16x512xf32>
    %cst_11 = arith.constant 0.000000e+00 : f32
    %15 = vector.broadcast %cst_11 : f32 to vector<16x512xf32>
    %16 = arith.maximumf %14, %15 : vector<16x512xf32>
    %17 = arith.truncf %16 : vector<16x512xf32> to vector<16x512xbf16>
    %c0_12 = arith.constant 0 : index
    %c0_13 = arith.constant 0 : index
    %18 = vector.load %arg6[%c0_12, %c0_13] : memref<512x512xbf16, #tpu.memory_space<vmem>>, vector<512x512xbf16>
    %cst_14 = arith.constant dense<0.000000e+00> : vector<16x512xf32>
    %19 = tpu.matmul %17, %18, %cst_14 {dimension_numbers = #tpu.dot_dimension_numbers<[1], [0], [0], [1], [0, 0, 1, 1], [], []>} : vector<16x512xbf16>, vector<512x512xbf16>, vector<16x512xf32> -> vector<16x512xf32>
    %c0_15 = arith.constant 0 : index
    %c0_16 = arith.constant 0 : index
    %20 = vector.load %arg7[%c0_15, %c0_16] : memref<1x512xf32, #tpu.memory_space<vmem>>, vector<1x512xf32>
    %21 = vector.broadcast %20 : vector<1x512xf32> to vector<16x512xf32>
    %22 = arith.addf %19, %21 : vector<16x512xf32>
    %c0_17 = arith.constant 0 : index
    %c0_18 = arith.constant 0 : index
    %23 = vector.load %arg8[%c0_17, %c0_18] : memref<16x512xf32, #tpu.memory_space<vmem>>, vector<16x512xf32>
    tpu.vector_store %arg8[%c0_17, %c0_18], %22 {strides = array<i32>} : memref<16x512xf32, #tpu.memory_space<vmem>>, vector<16x512xf32>,
    return
  }
  func.func @transform_0(%arg0: i32) -> (i32, i32) {
    %c0_i32 = arith.constant 0 : i32
    %c0_i32_0 = arith.constant 0 : i32
    return %arg0, %c0_i32 : i32, i32
  }
  func.func @transform_1(%arg0: i32) -> (i32, i32) {
    %c0_i32 = arith.constant 0 : i32
    %c0_i32_0 = arith.constant 0 : i32
    %c0_i32_1 = arith.constant 0 : i32
    return %c0_i32, %c0_i32_0 : i32, i32
  }
  func.func @transform_2(%arg0: i32) -> (i32, i32) {
    %c0_i32 = arith.constant 0 : i32
    %c0_i32_0 = arith.constant 0 : i32
    %c0_i32_1 = arith.constant 0 : i32
    return %c0_i32, %c0_i32_0 : i32, i32
  }
  func.func @transform_3(%arg0: i32) -> (i32, i32) {
    %c0_i32 = arith.constant 0 : i32
    %c0_i32_0 = arith.constant 0 : i32
    %c0_i32_1 = arith.constant 0 : i32
    return %c0_i32, %c0_i32_0 : i32, i32
  }
  func.func @transform_4(%arg0: i32) -> (i32, i32) {
    %c0_i32 = arith.constant 0 : i32
    %c0_i32_0 = arith.constant 0 : i32
    %c0_i32_1 = arith.constant 0 : i32
    return %c0_i32, %c0_i32_0 : i32, i32
  }
  func.func @transform_5(%arg0: i32) -> (i32, i32) {
    %c0_i32 = arith.constant 0 : i32
    %c0_i32_0 = arith.constant 0 : i32
    %c0_i32_1 = arith.constant 0 : i32
    return %c0_i32, %c0_i32_0 : i32, i32
  }
  func.func @transform_6(%arg0: i32) -> (i32, i32) {
    %c0_i32 = arith.constant 0 : i32
    %c0_i32_0 = arith.constant 0 : i32
    %c0_i32_1 = arith.constant 0 : i32
    return %c0_i32, %c0_i32_0 : i32, i32
  }
  func.func @transform_7(%arg0: i32) -> (i32, i32) {
    %c0_i32 = arith.constant 0 : i32
    %c0_i32_0 = arith.constant 0 : i32
    return %arg0, %c0_i32 : i32, i32
  }
}

</mosaic_0001>

<llo_original>
// kernel: _lambda_.1
$region0: #{_lambda_.1}
  #allocation0 [shape = 'u32[]', space=smem, size = 0x4, offset = 0x4, fixed_abs, tag = 'smem constant byte address 0x4 - core index']
  #allocation1 [shape = 'u32[144,128]{1,0:T(1,128)}', space=vmem, size = 0x12000, scoped, tag = 'internal scratch']
  %s0 = inlined_call_operand.vmem [shape: f32[20,32], index: 0, kind: input, shape index: {}]
  %s1 = inlined_call_operand.vmem [shape: bf16[32,512], index: 1, kind: input, shape index: {}]
  %s2 = inlined_call_operand.vmem [shape: f32[1,512], index: 2, kind: input, shape index: {}]
  %s3 = inlined_call_operand.vmem [shape: bf16[512,512], index: 3, kind: input, shape index: {}]
  %s4 = inlined_call_operand.vmem [shape: f32[1,512], index: 4, kind: input, shape index: {}]
  %s5 = inlined_call_operand.vmem [shape: bf16[512,512], index: 5, kind: input, shape index: {}]
  %s6 = inlined_call_operand.vmem [shape: f32[1,512], index: 6, kind: input, shape index: {}]
  %s7 = inlined_call_operand.hbm [shape: f32[20,512], index: 7, kind: output, shape index: {}]
  %s8 = sld [smem:[#allocation0]]
  $region61: #{_lambda_.1} parent=0
    _
  %s10 = ssub.s32 1, %s8
  %s11 = scalar_select 0, %s10, %s8
  $region1: #{_lambda_.1} parent=0
    #allocation2 [shape = 'u8[65536]{0}', space=vmem, size = 0x10000, scoped, tag = 'output window, operand 0']
    #allocation3 [shape = 's32[2]{0}', space=sflag, size = 0x8, scoped, tag = 'scoped memory for _lambda_.1']
    %12 = vsyncpa [#allocation3], 0
    %s13 = scalar_lea.sflag [#allocation3], 1
    %14 = vsyncpa %s13, 0
    loop: start=0, step=1, limit=4
    $region2: #{_lambda_.1} parent=1 // loop_pre_header
      _
    $region3: #{_lambda_.1} parent=1 // loop_header
      %s16 = sphi 0, %s20
      %p17 = scmp.ge.s32.totalorder %s16, 4
      %s26 = sphi 0, %s28
      %s29 = sphi 0, %s26
      %s30 = sphi 0, %s29
      %s46 = sphi 0, %s30
      %s50 = sphi 0, %s50
      %s52 = sphi 0, %s50
      %s53 = sphi 0, %s52
      %s67 = sphi 0, %s53
      %s71 = sphi 0, %s71
      %s73 = sphi 0, %s71
      %s74 = sphi 0, %s73
      %s88 = sphi 0, %s74
      %s92 = sphi 0, %s92
      %s94 = sphi 0, %s92
      %s95 = sphi 0, %s94
      %s109 = sphi 0, %s95
      %s113 = sphi 0, %s113
      %s115 = sphi 0, %s113
      %s116 = sphi 0, %s115
      %s130 = sphi 0, %s116
      %s134 = sphi 0, %s134
      %s136 = sphi 0, %s134
      %s137 = sphi 0, %s136
      %s151 = sphi 0, %s137
      %s155 = sphi 0, %s155
      %s157 = sphi 0, %s155
      %s158 = sphi 0, %s157
      %s172 = sphi 0, %s158
      %s178 = sphi 0, %s180
      %s181 = sphi 0, %s178
      %s182 = sphi 0, %s181
      %s198 = sphi 0, %s182
    $region4: #{_lambda_.1} parent=1 // loop_header_branch
      %19 = sbr.rel (%p17) target = $region8
    $region5: #{_lambda_.1} parent=1 // loop_body
      %s21 = ssub.s32 %s16, 1
      %s22 = ssub.s32 %s16, 2
      %s23 = sadd.s32 %s16, 1
      %s24 = ssub.s32 %s16, %s23
      %p25 = scmp.eq.s32.totalorder %s24, 0
      %s27 = sadd.s32 %s26, 1
      %s28 = scalar_select %p25, %s26, %s27
      %p31 = pneg %p25
      %p32 = scmp.eq.s32.totalorder %s16, 1
      %p33 = por %p31, %p32
      %p34 = scmp.ne.s32.totalorder %s26, %s29
      %p35 = scmp.eq.s32.totalorder %s16, 0
      %p36 = por %p34, %p35
      %p37 = scmp.ne.s32.totalorder %s26, %s29
      %p38 = scmp.eq.s32.totalorder %s21, 1
      %p39 = por %p37, %p38
      %p40 = scmp.ne.s32.totalorder %s29, %s30
      %p41 = scmp.eq.s32.totalorder %s21, 0
      %p42 = por %p40, %p41
      %p43 = scmp.ne.s32.totalorder %s29, %s30
      %p44 = scmp.eq.s32.totalorder %s22, 1
      %p45 = por %p43, %p44
      %p47 = scmp.ne.s32.totalorder %s30, %s46
      %p48 = scmp.eq.s32.totalorder %s22, 0
      %p49 = por %p47, %p48
      %s51 = sadd.s32 %s50, 1
      %p54 = scmp.eq.s32.totalorder %s16, 1
      %p55 = scmp.ne.s32.totalorder %s50, %s52
      %p56 = scmp.eq.s32.totalorder %s16, 0
      %p57 = por %p55, %p56
      %p58 = scmp.ne.s32.totalorder %s50, %s52
      %p59 = scmp.eq.s32.totalorder %s21, 1
      %p60 = por %p58, %p59
      %p61 = scmp.ne.s32.totalorder %s52, %s53
      %p62 = scmp.eq.s32.totalorder %s21, 0
      %p63 = por %p61, %p62
      %p64 = scmp.ne.s32.totalorder %s52, %s53
      %p65 = scmp.eq.s32.totalorder %s22, 1
      %p66 = por %p64, %p65
      %p68 = scmp.ne.s32.totalorder %s53, %s67
      %p69 = scmp.eq.s32.totalorder %s22, 0
      %p70 = por %p68, %p69
      %s72 = sadd.s32 %s71, 1
      %p75 = scmp.eq.s32.totalorder %s16, 1
      %p76 = scmp.ne.s32.totalorder %s71, %s73
      %p77 = scmp.eq.s32.totalorder %s16, 0
      %p78 = por %p76, %p77
      %p79 = scmp.ne.s32.totalorder %s71, %s73
      %p80 = scmp.eq.s32.totalorder %s21, 1
      %p81 = por %p79, %p80
      %p82 = scmp.ne.s32.totalorder %s73, %s74
      %p83 = scmp.eq.s32.totalorder %s21, 0
      %p84 = por %p82, %p83
      %p85 = scmp.ne.s32.totalorder %s73, %s74
      %p86 = scmp.eq.s32.totalorder %s22, 1
      %p87 = por %p85, %p86
      %p89 = scmp.ne.s32.totalorder %s74, %s88
      %p90 = scmp.eq.s32.totalorder %s22, 0
      %p91 = por %p89, %p90
      %s93 = sadd.s32 %s92, 1
      %p96 = scmp.eq.s32.totalorder %s16, 1
      %p97 = scmp.ne.s32.totalorder %s92, %s94
      %p98 = scmp.eq.s32.totalorder %s16, 0
      %p99 = por %p97, %p98
      %p100 = scmp.ne.s32.totalorder %s92, %s94
      %p101 = scmp.eq.s32.totalorder %s21, 1
      %p102 = por %p100, %p101
      %p103 = scmp.ne.s32.totalorder %s94, %s95
      %p104 = scmp.eq.s32.totalorder %s21, 0
      %p105 = por %p103, %p104
      %p106 = scmp.ne.s32.totalorder %s94, %s95
      %p107 = scmp.eq.s32.totalorder %s22, 1
      %p108 = por %p106, %p107
      %p110 = scmp.ne.s32.totalorder %s95, %s109
      %p111 = scmp.eq.s32.totalorder %s22, 0
      %p112 = por %p110, %p111
      %s114 = sadd.s32 %s113, 1
      %p117 = scmp.eq.s32.totalorder %s16, 1
      %p118 = scmp.ne.s32.totalorder %s113, %s115
      %p119 = scmp.eq.s32.totalorder %s16, 0
      %p120 = por %p118, %p119
      %p121 = scmp.ne.s32.totalorder %s113, %s115
      %p122 = scmp.eq.s32.totalorder %s21, 1
      %p123 = por %p121, %p122
      %p124 = scmp.ne.s32.totalorder %s115, %s116
      %p125 = scmp.eq.s32.totalorder %s21, 0
      %p126 = por %p124, %p125
      %p127 = scmp.ne.s32.totalorder %s115, %s116
      %p128 = scmp.eq.s32.totalorder %s22, 1
      %p129 = por %p127, %p128
      %p131 = scmp.ne.s32.totalorder %s116, %s130
      %p132 = scmp.eq.s32.totalorder %s22, 0
      %p133 = por %p131, %p132
      %s135 = sadd.s32 %s134, 1
      %p138 = scmp.eq.s32.totalorder %s16, 1
      %p139 = scmp.ne.s32.totalorder %s134, %s136
      %p140 = scmp.eq.s32.totalorder %s16, 0
      %p141 = por %p139, %p140
      %p142 = scmp.ne.s32.totalorder %s134, %s136
      %p143 = scmp.eq.s32.totalorder %s21, 1
      %p144 = por %p142, %p143
      %p145 = scmp.ne.s32.totalorder %s136, %s137
      %p146 = scmp.eq.s32.totalorder %s21, 0
      %p147 = por %p145, %p146
      %p148 = scmp.ne.s32.totalorder %s136, %s137
      %p149 = scmp.eq.s32.totalorder %s22, 1
      %p150 = por %p148, %p149
      %p152 = scmp.ne.s32.totalorder %s137, %s151
      %p153 = scmp.eq.s32.totalorder %s22, 0
      %p154 = por %p152, %p153
      %s156 = sadd.s32 %s155, 1
      %p159 = scmp.eq.s32.totalorder %s16, 1
      %p160 = scmp.ne.s32.totalorder %s155, %s157
      %p161 = scmp.eq.s32.totalorder %s16, 0
      %p162 = por %p160, %p161
      %p163 = scmp.ne.s32.totalorder %s155, %s157
      %p164 = scmp.eq.s32.totalorder %s21, 1
      %p165 = por %p163, %p164
      %p166 = scmp.ne.s32.totalorder %s157, %s158
      %p167 = scmp.eq.s32.totalorder %s21, 0
      %p168 = por %p166, %p167
      %p169 = scmp.ne.s32.totalorder %s157, %s158
      %p170 = scmp.eq.s32.totalorder %s22, 1
      %p171 = por %p169, %p170
      %p173 = scmp.ne.s32.totalorder %s158, %s172
      %p174 = scmp.eq.s32.totalorder %s22, 0
      %p175 = por %p173, %p174
      %s176 = ssub.s32 %s16, %s23
      %p177 = scmp.eq.s32.totalorder %s176, 0
      %s179 = sadd.s32 %s178, 1
      %s180 = scalar_select %p177, %s178, %s179
      %p183 = pneg %p177
      %p184 = scmp.eq.s32.totalorder %s16, 1
      %p185 = por %p183, %p184
      %p186 = scmp.ne.s32.totalorder %s178, %s181
      %p187 = scmp.eq.s32.totalorder %s16, 0
      %p188 = por %p186, %p187
      %p189 = scmp.ne.s32.totalorder %s178, %s181
      %p190 = scmp.eq.s32.totalorder %s21, 1
      %p191 = por %p189, %p190
      %p192 = scmp.ne.s32.totalorder %s181, %s182
      %p193 = scmp.eq.s32.totalorder %s21, 0
      %p194 = por %p192, %p193
      %p195 = scmp.ne.s32.totalorder %s181, %s182
      %p196 = scmp.eq.s32.totalorder %s22, 1
      %p197 = por %p195, %p196
      %p199 = scmp.ne.s32.totalorder %s182, %s198
      %p200 = scmp.eq.s32.totalorder %s22, 0
      %p201 = por %p199, %p200
      %p202 = scmp.le.s32.totalorder 1, %s16
      %p203 = scmp.lt.s32.totalorder %s16, 3
      %p204 = pnand %p202, %p203
      %p205 = pneg %p204
      // Predicated region
      $region9: #{_lambda_.1} parent=5 // pred_check
        _
      $region10: #{_lambda_.1} parent=5 // pred_check_branch
        %207 = sbr.rel (%p204) target = $region12
      $region11: #{_lambda_.1} parent=5 // pred_region
        %s208 = ssub.s32 %s16, 1
        // Predicated region
        $region13: #{_lambda_.1} parent=11 // pred_check
          %p209 = pneg %p63
        $region14: #{_lambda_.1} parent=11 // pred_check_branch
          %211 = sbr.rel (%p209) target = $region16
        $region15: #{_lambda_.1} parent=11 // pred_region
          _
        $region16: #{_lambda_.1} parent=11 // pred_fallthru
          _
        // Predicated region
        $region17: #{_lambda_.1} parent=11 // pred_check
          %p212 = pneg %p84
        $region18: #{_lambda_.1} parent=11 // pred_check_branch
          %214 = sbr.rel (%p212) target = $region20
        $region19: #{_lambda_.1} parent=11 // pred_region
          _
        $region20: #{_lambda_.1} parent=11 // pred_fallthru
          _
        // Predicated region
        $region21: #{_lambda_.1} parent=11 // pred_check
          %p215 = pneg %p105
        $region22: #{_lambda_.1} parent=11 // pred_check_branch
          %217 = sbr.rel (%p215) target = $region24
        $region23: #{_lambda_.1} parent=11 // pred_region
          _
        $region24: #{_lambda_.1} parent=11 // pred_fallthru
          _
        // Predicated region
        $region25: #{_lambda_.1} parent=11 // pred_check
          %p218 = pneg %p126
        $region26: #{_lambda_.1} parent=11 // pred_check_branch
          %220 = sbr.rel (%p218) target = $region28
        $region27: #{_lambda_.1} parent=11 // pred_region
          _
        $region28: #{_lambda_.1} parent=11 // pred_fallthru
          _
        // Predicated region
        $region29: #{_lambda_.1} parent=11 // pred_check
          %p221 = pneg %p147
        $region30: #{_lambda_.1} parent=11 // pred_check_branch
          %223 = sbr.rel (%p221) target = $region32
        $region31: #{_lambda_.1} parent=11 // pred_region
          _
        $region32: #{_lambda_.1} parent=11 // pred_fallthru
          _
        // Predicated region
        $region33: #{_lambda_.1} parent=11 // pred_check
          %p224 = pneg %p168
        $region34: #{_lambda_.1} parent=11 // pred_check_branch
          %226 = sbr.rel (%p224) target = $region36
        $region35: #{_lambda_.1} parent=11 // pred_region
          _
        $region36: #{_lambda_.1} parent=11 // pred_fallthru
          _
      $region12: #{_lambda_.1} parent=5 // pred_fallthru
        _
      %p227 = scmp.lt.s32.totalorder %s16, 2
      // Predicated region
      $region37: #{_lambda_.1} parent=5 // pred_check
        %p228 = pneg %p227
      $region38: #{_lambda_.1} parent=5 // pred_check_branch
        %230 = sbr.rel (%p228) target = $region40
      $region39: #{_lambda_.1} parent=5 // pred_region
        // Predicated region
        $region41: #{_lambda_.1} parent=39 // pred_check
          %p231 = pneg %p36
        $region42: #{_lambda_.1} parent=39 // pred_check_branch
          %233 = sbr.rel (%p231) target = $region44
        $region43: #{_lambda_.1} parent=39 // pred_region
          %s234 = smul.u32 2, %s16
          %s235 = ssub.s32 3, %s234
          %p236 = scmp.lt.s32.totalorder %s235, 2
          %s237 = scalar_select %p236, %s235, 2
          %s238 = smul.u32 128, %s237
          %p239 = scmp.lt.s32.totalorder %s234, 2
          %s240 = scalar_select %p239, %s234, 2
          %s241 = smul.addr %s240, 8
          %s242 = scalar_lea.vmem %s0, %s241
          %s243 = smul.u32 2, %s16
          %s244 = ssub.s32 3, %s243
          %p245 = scmp.lt.s32.totalorder %s244, 2
          %s246 = scalar_select %p245, %s244, 2
          %s247 = smul.u32 128, %s246
        $region44: #{_lambda_.1} parent=39 // pred_fallthru
          _
      $region40: #{_lambda_.1} parent=5 // pred_fallthru
        _
      %p248 = scmp.le.s32.totalorder 1, %s16
      %p249 = scmp.lt.s32.totalorder %s16, 3
      %p250 = pnand %p248, %p249
      %p251 = pneg %p250
      // Predicated region
      $region45: #{_lambda_.1} parent=5 // pred_check
        _
      $region46: #{_lambda_.1} parent=5 // pred_check_branch
        %253 = sbr.rel (%p250) target = $region48
      $region47: #{_lambda_.1} parent=5 // pred_region
        %s254 = ssub.s32 %s16, 1
        %s255 = smul.u32 2, %s21
        %s256 = ssub.s32 3, %s255
        %p257 = scmp.lt.s32.totalorder %s256, 2
        %s258 = scalar_select %p257, %s256, 2
        %s259 = smul.u32 128, %s258
        %p260 = scmp.lt.s32.totalorder %s255, 2
        %s261 = scalar_select %p260, %s255, 2
        %s262 = smul.addr %s261, 8
        %s263 = scalar_lea.vmem %s0, %s262
        %p264 = pneg %p42
        %p265 = pneg %p39
        %p266 = pneg %p63
        %p267 = pneg %p60
        %p268 = pneg %p84
        %p269 = pneg %p81
        %p270 = pneg %p105
        %p271 = pneg %p102
        %p272 = pneg %p126
        %p273 = pneg %p123
        %p274 = pneg %p147
        %p275 = pneg %p144
        %p276 = pneg %p168
        %p277 = pneg %p165
        %p278 = pneg %p194
        %p279 = pneg %p191
        %s280 = sand.u32 %s181, 1
        %s281 = scalar_lea.sflag [#allocation3], %s280
        %s282 = sand.u32 %s181, 1
        %s283 = smul.addr %s282, 64
        %s284 = scalar_lea.vmem [#allocation2], %s283
        %s285 = smul.u32 2, %s21
        %s286 = ssub.s32 3, %s285
        %p287 = scmp.lt.s32.totalorder %s286, 2
        %s288 = scalar_select %p287, %s286, 2
        %s289 = smul.u32 128, %s288
        %p290 = scmp.lt.s32.totalorder %s285, 2
        %s291 = scalar_select %p290, %s285, 2
        %s292 = smul.addr %s291, 8
        %s293 = scalar_lea.vmem %s0, %s292
        %s294 = smul.u32 2, %s21
        %s295 = ssub.s32 3, %s294
        %p296 = scmp.lt.s32.totalorder %s295, 2
        %s297 = scalar_select %p296, %s295, 2
        %s298 = smul.u32 128, %s297
        %s299 = smul.u32 2, %s21
        %s300 = ssub.s32 3, %s299
        %p301 = scmp.lt.s32.totalorder %s300, 2
        %s302 = scalar_select %p301, %s300, 2
        %s303 = smul.u32 128, %s302
        %s304 = smul.u32 %s303, 4
        %v306 = vld [vmem:[%s293] sm:$0xff]
        %v307 = vld [vmem:[%s293 + $0x8] sm:$0xff]
        %v308 = vpack.c.bf16 %v307, %v306
        %v309 = vld [vmem:[%s1] sm:$0xff]
        %v310 = vld [vmem:[%s1 + $0x8] sm:$0xff]
        %v311 = vld [vmem:[%s1 + $0x10] sm:$0xff]
        %v312 = vld [vmem:[%s1 + $0x18] sm:$0xff]
        %v313 = vld [vmem:[%s1 + $0x20] sm:$0xff]
        %v314 = vld [vmem:[%s1 + $0x28] sm:$0xff]
        %v315 = vld [vmem:[%s1 + $0x30] sm:$0xff]
        %v316 = vld [vmem:[%s1 + $0x38] sm:$0xff]
        %v317 = vld [vmem:[%s2] sm:$0xf]
        %v319 = vlaneseq
        %v320 = vshrl.u32 %v319, 7
        %v321 = vsub.s32 0, %v320
        %v322 = vrot.slane %v317, %v321
        %v323 = vlaneseq
        %v324 = vshrl.u32 %v323, 7
        %v325 = vsub.s32 1, %v324
        %v326 = vrot.slane %v317, %v325
        %v327 = vlaneseq
        %v328 = vshrl.u32 %v327, 7
        %v329 = vsub.s32 2, %v328
        %v330 = vrot.slane %v317, %v329
        %v331 = vlaneseq
        %v332 = vshrl.u32 %v331, 7
        %v333 = vsub.s32 3, %v332
        %v334 = vrot.slane %v317, %v333
        %v347 = vunpack.c.l.b16 %v309
        %v348 = vunpack.c.h.b16 %v309
        %v349 = vunpack.c.l.b16 %v310
        %v350 = vunpack.c.h.b16 %v310
        %v351 = vunpack.c.l.b16 %v311
        %v352 = vunpack.c.h.b16 %v311
        %v353 = vunpack.c.l.b16 %v312
        %v354 = vunpack.c.h.b16 %v312
        %v355 = vunpack.c.l.b16 %v313
        %v356 = vunpack.c.h.b16 %v313
        %v357 = vunpack.c.l.b16 %v314
        %v358 = vunpack.c.h.b16 %v314
        %v359 = vunpack.c.l.b16 %v315
        %v360 = vunpack.c.h.b16 %v315
        %v361 = vunpack.c.l.b16 %v316
        %v362 = vunpack.c.h.b16 %v316
        %v363 = vpack.c.b16 %v351, %v347
        %v364 = vpack.c.b16 %v352, %v348
        %v365 = vpack.c.b16 %v353, %v349
        %v366 = vpack.c.b16 %v354, %v350
        %v367 = vpack.c.b16 %v359, %v355
        %v368 = vpack.c.b16 %v360, %v356
        %v369 = vpack.c.b16 %v361, %v357
        %v370 = vpack.c.b16 %v362, %v358
        %vm379 = vcmask 261120
        %v381 = vsel %vm379, %v308, 0
        %383 = vmatprep.subr.bf16.mxu0 %v364
        %384 = vmatpush1.bf16.msra.mxu0 %v363
        %385 = vmatprep.subr.bf16.mxu0 %v368
        %386 = vmatpush1.bf16.msra.mxu0 %v367
        %387 = vmatprep.subr.bf16.mxu0 0
        %388 = vmatpush1.bf16.msra.mxu0 0
        %389 = vmatprep.subr.bf16.mxu0 0
        %390 = vmatpush1.bf16.msra.mxu0 0
        %391 = vmatprep.subr.bf16.mxu0 0
        %392 = vmatpush1.bf16.msra.mxu0 0
        %393 = vmatprep.subr.bf16.mxu0 0
        %394 = vmatpush1.bf16.msra.mxu0 0
        %395 = vmatprep.subr.bf16.mxu0 0
        %396 = vmatpush1.bf16.msra.mxu0 0
        %397 = vmatprep.subr.bf16.mxu0 0
        %398 = vmatpush1.bf16.msra.mxu0 0
        %399 = vmatprep.subr.bf16.mxu0 0
        %400 = vmatpush1.bf16.msra.mxu0 0
        %401 = vmatprep.subr.bf16.mxu0 0
        %402 = vmatpush1.bf16.msra.mxu0 0
        %403 = vmatprep.subr.bf16.mxu0 0
        %404 = vmatpush1.bf16.msra.mxu0 0
        %405 = vmatprep.subr.bf16.mxu0 0
        %406 = vmatpush1.bf16.msra.mxu0 0
        %407 = vmatprep.subr.bf16.mxu0 0
        %408 = vmatpush1.bf16.msra.mxu0 0
        %409 = vmatprep.subr.bf16.mxu0 0
        %410 = vmatpush1.bf16.msra.mxu0 0
        %411 = vmatprep.subr.bf16.mxu0 0
        %412 = vmatpush1.bf16.msra.mxu0 0
        %413 = vmatprep.subr.bf16.mxu0 0
        %414 = vmatpush1.bf16.msra.mxu0 0
        %415 = vmatprep.mubr.bf16.mxu0 0
        %416 = vmatmul.mubr.bf16.gmra.mrb[0].mxu0 %v381
        %v417 = vpop.f32.mrb[0].mxu0
        %v418 = vadd.f32 %v322, %v417
        %v419 = vpop.f32.mrb[0].mxu0
        %v420 = vadd.f32 %v326, %v419
        %v421 = vpop.f32.mrb[0].mxu0
        %v422 = vadd.f32 %v322, %v421
        %v423 = vpop.f32.mrb[0].mxu0
        %v424 = vadd.f32 %v326, %v423
        %425 = vdwg.mxu0
        %426 = vmatprep.subr.bf16.mxu0 %v366
        %427 = vmatpush1.bf16.msra.mxu0 %v365
        %428 = vmatprep.subr.bf16.mxu0 %v370
        %429 = vmatpush1.bf16.msra.mxu0 %v369
        %430 = vmatprep.subr.bf16.mxu0 0
        %431 = vmatpush1.bf16.msra.mxu0 0
        %432 = vmatprep.subr.bf16.mxu0 0
        %433 = vmatpush1.bf16.msra.mxu0 0
        %434 = vmatprep.subr.bf16.mxu0 0
        %435 = vmatpush1.bf16.msra.mxu0 0
        %436 = vmatprep.subr.bf16.mxu0 0
        %437 = vmatpush1.bf16.msra.mxu0 0
        %438 = vmatprep.subr.bf16.mxu0 0
        %439 = vmatpush1.bf16.msra.mxu0 0
        %440 = vmatprep.subr.bf16.mxu0 0
        %441 = vmatpush1.bf16.msra.mxu0 0
        %442 = vmatprep.subr.bf16.mxu0 0
        %443 = vmatpush1.bf16.msra.mxu0 0
        %444 = vmatprep.subr.bf16.mxu0 0
        %445 = vmatpush1.bf16.msra.mxu0 0
        %446 = vmatprep.subr.bf16.mxu0 0
        %447 = vmatpush1.bf16.msra.mxu0 0
        %448 = vmatprep.subr.bf16.mxu0 0
        %449 = vmatpush1.bf16.msra.mxu0 0
        %450 = vmatprep.subr.bf16.mxu0 0
        %451 = vmatpush1.bf16.msra.mxu0 0
        %452 = vmatprep.subr.bf16.mxu0 0
        %453 = vmatpush1.bf16.msra.mxu0 0
        %454 = vmatprep.subr.bf16.mxu0 0
        %455 = vmatpush1.bf16.msra.mxu0 0
        %456 = vmatprep.subr.bf16.mxu0 0
        %457 = vmatpush1.bf16.msra.mxu0 0
        %458 = vmatprep.mubr.bf16.mxu0 0
        %459 = vmatmul.mubr.bf16.gmra.mrb[0].mxu0 %v381
        %v460 = vpop.f32.mrb[0].mxu0
        %v461 = vadd.f32 %v330, %v460
        %v462 = vpop.f32.mrb[0].mxu0
        %v463 = vadd.f32 %v334, %v462
        %v464 = vpop.f32.mrb[0].mxu0
        %v465 = vadd.f32 %v330, %v464
        %v466 = vpop.f32.mrb[0].mxu0
        %v467 = vadd.f32 %v334, %v466
        %468 = vdwg.mxu0
        %v469 = vmax.f32 %v418, 0.0
        %v470 = vmax.f32 %v420, 0.0
        %v471 = vmax.f32 %v461, 0.0
        %v472 = vmax.f32 %v463, 0.0
        %v473 = vmax.f32 %v422, 0.0
        %v474 = vmax.f32 %v424, 0.0
        %v475 = vmax.f32 %v465, 0.0
        %v476 = vmax.f32 %v467, 0.0
        %v477 = vpack.c.bf16 %v473, %v469
        %v478 = vpack.c.bf16 %v474, %v470
        %v479 = vpack.c.bf16 %v475, %v471
        %v480 = vpack.c.bf16 %v476, %v472
        %v481 = vld [vmem:[%s3] sm:$0xff]
        %v482 = vld [vmem:[%s3 + $0x8] sm:$0xff]
        %v483 = vld [vmem:[%s3 + $0x10] sm:$0xff]
        %v484 = vld [vmem:[%s3 + $0x18] sm:$0xff]
        %v485 = vld [vmem:[%s3 + $0x20] sm:$0xff]
        %v486 = vld [vmem:[%s3 + $0x28] sm:$0xff]
        %v487 = vld [vmem:[%s3 + $0x30] sm:$0xff]
        %v488 = vld [vmem:[%s3 + $0x38] sm:$0xff]
        %v489 = vld [vmem:[%s3 + $0x40] sm:$0xff]
        %v490 = vld [vmem:[%s3 + $0x48] sm:$0xff]
        %v491 = vld [vmem:[%s3 + $0x50] sm:$0xff]
        %v492 = vld [vmem:[%s3 + $0x58] sm:$0xff]
        %v493 = vld [vmem:[%s3 + $0x60] sm:$0xff]
        %v494 = vld [vmem:[%s3 + $0x68] sm:$0xff]
        %v495 = vld [vmem:[%s3 + $0x70] sm:$0xff]
        %v496 = vld [vmem:[%s3 + $0x78] sm:$0xff]
        %v497 = vld [vmem:[%s3 + $0x80] sm:$0xff]
        %v498 = vld [vmem:[%s3 + $0x88] sm:$0xff]
        %v499 = vld [vmem:[%s3 + $0x90] sm:$0xff]
        %v500 = vld [vmem:[%s3 + $0x98] sm:$0xff]
        %v501 = vld [vmem:[%s3 + $0xa0] sm:$0xff]
        %v502 = vld [vmem:[%s3 + $0xa8] sm:$0xff]
        %v503 = vld [vmem:[%s3 + $0xb0] sm:$0xff]
        %v504 = vld [vmem:[%s3 + $0xb8] sm:$0xff]
        %v505 = vld [vmem:[%s3 + $0xc0] sm:$0xff]
        %v506 = vld [vmem:[%s3 + $0xc8] sm:$0xff]
        %v507 = vld [vmem:[%s3 + $0xd0] sm:$0xff]
        %v508 = vld [vmem:[%s3 + $0xd8] sm:$0xff]
        %v509 = vld [vmem:[%s3 + $0xe0] sm:$0xff]
        %v510 = vld [vmem:[%s3 + $0xe8] sm:$0xff]
        %v511 = vld [vmem:[%s3 + $0xf0] sm:$0xff]
        %v512 = vld [vmem:[%s3 + $0xf8] sm:$0xff]
        %v513 = vld [vmem:[%s3 + $0x100] sm:$0xff]
        %v514 = vld [vmem:[%s3 + $0x108] sm:$0xff]
        %v515 = vld [vmem:[%s3 + $0x110] sm:$0xff]
        %v516 = vld [vmem:[%s3 + $0x118] sm:$0xff]
        %v517 = vld [vmem:[%s3 + $0x120] sm:$0xff]
        %v518 = vld [vmem:[%s3 + $0x128] sm:$0xff]
        %v519 = vld [vmem:[%s3 + $0x130] sm:$0xff]
        %v520 = vld [vmem:[%s3 + $0x138] sm:$0xff]
        %v521 = vld [vmem:[%s3 + $0x140] sm:$0xff]
        %v522 = vld [vmem:[%s3 + $0x148] sm:$0xff]
        %v523 = vld [vmem:[%s3 + $0x150] sm:$0xff]
        %v524 = vld [vmem:[%s3 + $0x158] sm:$0xff]
        %v525 = vld [vmem:[%s3 + $0x160] sm:$0xff]
        %v526 = vld [vmem:[%s3 + $0x168] sm:$0xff]
        %v527 = vld [vmem:[%s3 + $0x170] sm:$0xff]
        %v528 = vld [vmem:[%s3 + $0x178] sm:$0xff]
        %v529 = vld [vmem:[%s3 + $0x180] sm:$0xff]
        %v530 = vld [vmem:[%s3 + $0x188] sm:$0xff]
        %v531 = vld [vmem:[%s3 + $0x190] sm:$0xff]
        %v532 = vld [vmem:[%s3 + $0x198] sm:$0xff]
        %v533 = vld [vmem:[%s3 + $0x1a0] sm:$0xff]
        %v534 = vld [vmem:[%s3 + $0x1a8] sm:$0xff]
        %v535 = vld [vmem:[%s3 + $0x1b0] sm:$0xff]
        %v536 = vld [vmem:[%s3 + $0x1b8] sm:$0xff]
        %v537 = vld [vmem:[%s3 + $0x1c0] sm:$0xff]
        %v538 = vld [vmem:[%s3 + $0x1c8] sm:$0xff]
        %v539 = vld [vmem:[%s3 + $0x1d0] sm:$0xff]
        %v540 = vld [vmem:[%s3 + $0x1d8] sm:$0xff]
        %v541 = vld [vmem:[%s3 + $0x1e0] sm:$0xff]
        %v542 = vld [vmem:[%s3 + $0x1e8] sm:$0xff]
        %v543 = vld [vmem:[%s3 + $0x1f0] sm:$0xff]
        %v544 = vld [vmem:[%s3 + $0x1f8] sm:$0xff]
        %v545 = vld [vmem:[%s3 + $0x200] sm:$0xff]
        %v546 = vld [vmem:[%s3 + $0x208] sm:$0xff]
        %v547 = vld [vmem:[%s3 + $0x210] sm:$0xff]
        %v548 = vld [vmem:[%s3 + $0x218] sm:$0xff]
        %v549 = vld [vmem:[%s3 + $0x220] sm:$0xff]
        %v550 = vld [vmem:[%s3 + $0x228] sm:$0xff]
        %v551 = vld [vmem:[%s3 + $0x230] sm:$0xff]
        %v552 = vld [vmem:[%s3 + $0x238] sm:$0xff]
        %v553 = vld [vmem:[%s3 + $0x240] sm:$0xff]
        %v554 = vld [vmem:[%s3 + $0x248] sm:$0xff]
        %v555 = vld [vmem:[%s3 + $0x250] sm:$0xff]
        %v556 = vld [vmem:[%s3 + $0x258] sm:$0xff]
        %v557 = vld [vmem:[%s3 + $0x260] sm:$0xff]
        %v558 = vld [vmem:[%s3 + $0x268] sm:$0xff]
        %v559 = vld [vmem:[%s3 + $0x270] sm:$0xff]
        %v560 = vld [vmem:[%s3 + $0x278] sm:$0xff]
        %v561 = vld [vmem:[%s3 + $0x280] sm:$0xff]
        %v562 = vld [vmem:[%s3 + $0x288] sm:$0xff]
        %v563 = vld [vmem:[%s3 + $0x290] sm:$0xff]
        %v564 = vld [vmem:[%s3 + $0x298] sm:$0xff]
        %v565 = vld [vmem:[%s3 + $0x2a0] sm:$0xff]
        %v566 = vld [vmem:[%s3 + $0x2a8] sm:$0xff]
        %v567 = vld [vmem:[%s3 + $0x2b0] sm:$0xff]
        %v568 = vld [vmem:[%s3 + $0x2b8] sm:$0xff]
        %v569 = vld [vmem:[%s3 + $0x2c0] sm:$0xff]
        %v570 = vld [vmem:[%s3 + $0x2c8] sm:$0xff]
        %v571 = vld [vmem:[%s3 + $0x2d0] sm:$0xff]
        %v572 = vld [vmem:[%s3 + $0x2d8] sm:$0xff]
        %v573 = vld [vmem:[%s3 + $0x2e0] sm:$0xff]
        %v574 = vld [vmem:[%s3 + $0x2e8] sm:$0xff]
        %v575 = vld [vmem:[%s3 + $0x2f0] sm:$0xff]
        %v576 = vld [vmem:[%s3 + $0x2f8] sm:$0xff]
        %v577 = vld [vmem:[%s3 + $0x300] sm:$0xff]
        %v578 = vld [vmem:[%s3 + $0x308] sm:$0xff]
        %v579 = vld [vmem:[%s3 + $0x310] sm:$0xff]
        %v580 = vld [vmem:[%s3 + $0x318] sm:$0xff]
        %v581 = vld [vmem:[%s3 + $0x320] sm:$0xff]
        %v582 = vld [vmem:[%s3 + $0x328] sm:$0xff]
        %v583 = vld [vmem:[%s3 + $0x330] sm:$0xff]
        %v584 = vld [vmem:[%s3 + $0x338] sm:$0xff]
        %v585 = vld [vmem:[%s3 + $0x340] sm:$0xff]
        %v586 = vld [vmem:[%s3 + $0x348] sm:$0xff]
        %v587 = vld [vmem:[%s3 + $0x350] sm:$0xff]
        %v588 = vld [vmem:[%s3 + $0x358] sm:$0xff]
        %v589 = vld [vmem:[%s3 + $0x360] sm:$0xff]
        %v590 = vld [vmem:[%s3 + $0x368] sm:$0xff]
        %v591 = vld [vmem:[%s3 + $0x370] sm:$0xff]
        %v592 = vld [vmem:[%s3 + $0x378] sm:$0xff]
        %v593 = vld [vmem:[%s3 + $0x380] sm:$0xff]
        %v594 = vld [vmem:[%s3 + $0x388] sm:$0xff]
        %v595 = vld [vmem:[%s3 + $0x390] sm:$0xff]
        %v596 = vld [vmem:[%s3 + $0x398] sm:$0xff]
        %v597 = vld [vmem:[%s3 + $0x3a0] sm:$0xff]
        %v598 = vld [vmem:[%s3 + $0x3a8] sm:$0xff]
        %v599 = vld [vmem:[%s3 + $0x3b0] sm:$0xff]
        %v600 = vld [vmem:[%s3 + $0x3b8] sm:$0xff]
        %v601 = vld [vmem:[%s3 + $0x3c0] sm:$0xff]
        %v602 = vld [vmem:[%s3 + $0x3c8] sm:$0xff]
        %v603 = vld [vmem:[%s3 + $0x3d0] sm:$0xff]
        %v604 = vld [vmem:[%s3 + $0x3d8] sm:$0xff]
        %v605 = vld [vmem:[%s3 + $0x3e0] sm:$0xff]
        %v606 = vld [vmem:[%s3 + $0x3e8] sm:$0xff]
        %v607 = vld [vmem:[%s3 + $0x3f0] sm:$0xff]
        %v608 = vld [vmem:[%s3 + $0x3f8] sm:$0xff]
        %v609 = vld [vmem:[%s4] sm:$0xf]
        %v611 = vlaneseq
        %v612 = vshrl.u32 %v611, 7
        %v613 = vsub.s32 0, %v612
        %v614 = vrot.slane %v609, %v613
        %v615 = vlaneseq
        %v616 = vshrl.u32 %v615, 7
        %v617 = vsub.s32 1, %v616
        %v618 = vrot.slane %v609, %v617
        %v619 = vlaneseq
        %v620 = vshrl.u32 %v619, 7
        %v621 = vsub.s32 2, %v620
        %v622 = vrot.slane %v609, %v621
        %v623 = vlaneseq
        %v624 = vshrl.u32 %v623, 7
        %v625 = vsub.s32 3, %v624
        %v626 = vrot.slane %v609, %v625
        %v759 = vunpack.c.l.b16 %v481
        %v760 = vunpack.c.h.b16 %v481
        %v761 = vunpack.c.l.b16 %v482
        %v762 = vunpack.c.h.b16 %v482
        %v763 = vunpack.c.l.b16 %v483
        %v764 = vunpack.c.h.b16 %v483
        %v765 = vunpack.c.l.b16 %v484
        %v766 = vunpack.c.h.b16 %v484
        %v767 = vunpack.c.l.b16 %v485
        %v768 = vunpack.c.h.b16 %v485
        %v769 = vunpack.c.l.b16 %v486
        %v770 = vunpack.c.h.b16 %v486
        %v771 = vunpack.c.l.b16 %v487
        %v772 = vunpack.c.h.b16 %v487
        %v773 = vunpack.c.l.b16 %v488
        %v774 = vunpack.c.h.b16 %v488
        %v775 = vunpack.c.l.b16 %v489
        %v776 = vunpack.c.h.b16 %v489
        %v777 = vunpack.c.l.b16 %v490
        %v778 = vunpack.c.h.b16 %v490
        %v779 = vunpack.c.l.b16 %v491
        %v780 = vunpack.c.h.b16 %v491
        %v781 = vunpack.c.l.b16 %v492
        %v782 = vunpack.c.h.b16 %v492
        %v783 = vunpack.c.l.b16 %v493
        %v784 = vunpack.c.h.b16 %v493
        %v785 = vunpack.c.l.b16 %v494
        %v786 = vunpack.c.h.b16 %v494
        %v787 = vunpack.c.l.b16 %v495
        %v788 = vunpack.c.h.b16 %v495
        %v789 = vunpack.c.l.b16 %v496
        %v790 = vunpack.c.h.b16 %v496
        %v791 = vunpack.c.l.b16 %v497
        %v792 = vunpack.c.h.b16 %v497
        %v793 = vunpack.c.l.b16 %v498
        %v794 = vunpack.c.h.b16 %v498
        %v795 = vunpack.c.l.b16 %v499
        %v796 = vunpack.c.h.b16 %v499
        %v797 = vunpack.c.l.b16 %v500
        %v798 = vunpack.c.h.b16 %v500
        %v799 = vunpack.c.l.b16 %v501
        %v800 = vunpack.c.h.b16 %v501
        %v801 = vunpack.c.l.b16 %v502
        %v802 = vunpack.c.h.b16 %v502
        %v803 = vunpack.c.l.b16 %v503
        %v804 = vunpack.c.h.b16 %v503
        %v805 = vunpack.c.l.b16 %v504
        %v806 = vunpack.c.h.b16 %v504
        %v807 = vunpack.c.l.b16 %v505
        %v808 = vunpack.c.h.b16 %v505
        %v809 = vunpack.c.l.b16 %v506
        %v810 = vunpack.c.h.b16 %v506
        %v811 = vunpack.c.l.b16 %v507
        %v812 = vunpack.c.h.b16 %v507
        %v813 = vunpack.c.l.b16 %v508
        %v814 = vunpack.c.h.b16 %v508
        %v815 = vunpack.c.l.b16 %v509
        %v816 = vunpack.c.h.b16 %v509
        %v817 = vunpack.c.l.b16 %v510
        %v818 = vunpack.c.h.b16 %v510
        %v819 = vunpack.c.l.b16 %v511
        %v820 = vunpack.c.h.b16 %v511
        %v821 = vunpack.c.l.b16 %v512
        %v822 = vunpack.c.h.b16 %v512
        %v823 = vunpack.c.l.b16 %v513
        %v824 = vunpack.c.h.b16 %v513
        %v825 = vunpack.c.l.b16 %v514
        %v826 = vunpack.c.h.b16 %v514
        %v827 = vunpack.c.l.b16 %v515
        %v828 = vunpack.c.h.b16 %v515
        %v829 = vunpack.c.l.b16 %v516
        %v830 = vunpack.c.h.b16 %v516
        %v831 = vunpack.c.l.b16 %v517
        %v832 = vunpack.c.h.b16 %v517
        %v833 = vunpack.c.l.b16 %v518
        %v834 = vunpack.c.h.b16 %v518
        %v835 = vunpack.c.l.b16 %v519
        %v836 = vunpack.c.h.b16 %v519
        %v837 = vunpack.c.l.b16 %v520
        %v838 = vunpack.c.h.b16 %v520
        %v839 = vunpack.c.l.b16 %v521
        %v840 = vunpack.c.h.b16 %v521
        %v841 = vunpack.c.l.b16 %v522
        %v842 = vunpack.c.h.b16 %v522
        %v843 = vunpack.c.l.b16 %v523
        %v844 = vunpack.c.h.b16 %v523
        %v845 = vunpack.c.l.b16 %v524
        %v846 = vunpack.c.h.b16 %v524
        %v847 = vunpack.c.l.b16 %v525
        %v848 = vunpack.c.h.b16 %v525
        %v849 = vunpack.c.l.b16 %v526
        %v850 = vunpack.c.h.b16 %v526
        %v851 = vunpack.c.l.b16 %v527
        %v852 = vunpack.c.h.b16 %v527
        %v853 = vunpack.c.l.b16 %v528
        %v854 = vunpack.c.h.b16 %v528
        %v855 = vunpack.c.l.b16 %v529
        %v856 = vunpack.c.h.b16 %v529
        %v857 = vunpack.c.l.b16 %v530
        %v858 = vunpack.c.h.b16 %v530
        %v859 = vunpack.c.l.b16 %v531
        %v860 = vunpack.c.h.b16 %v531
        %v861 = vunpack.c.l.b16 %v532
        %v862 = vunpack.c.h.b16 %v532
        %v863 = vunpack.c.l.b16 %v533
        %v864 = vunpack.c.h.b16 %v533
        %v865 = vunpack.c.l.b16 %v534
        %v866 = vunpack.c.h.b16 %v534
        %v867 = vunpack.c.l.b16 %v535
        %v868 = vunpack.c.h.b16 %v535
        %v869 = vunpack.c.l.b16 %v536
        %v870 = vunpack.c.h.b16 %v536
        %v871 = vunpack.c.l.b16 %v537
        %v872 = vunpack.c.h.b16 %v537
        %v873 = vunpack.c.l.b16 %v538
        %v874 = vunpack.c.h.b16 %v538
        %v875 = vunpack.c.l.b16 %v539
        %v876 = vunpack.c.h.b16 %v539
        %v877 = vunpack.c.l.b16 %v540
        %v878 = vunpack.c.h.b16 %v540
        %v879 = vunpack.c.l.b16 %v541
        %v880 = vunpack.c.h.b16 %v541
        %v881 = vunpack.c.l.b16 %v542
        %v882 = vunpack.c.h.b16 %v542
        %v883 = vunpack.c.l.b16 %v543
        %v884 = vunpack.c.h.b16 %v543
        %v885 = vunpack.c.l.b16 %v544
        %v886 = vunpack.c.h.b16 %v544
        %v887 = vunpack.c.l.b16 %v545
        %v888 = vunpack.c.h.b16 %v545
        %v889 = vunpack.c.l.b16 %v546
        %v890 = vunpack.c.h.b16 %v546
        %v891 = vunpack.c.l.b16 %v547
        %v892 = vunpack.c.h.b16 %v547
        %v893 = vunpack.c.l.b16 %v548
        %v894 = vunpack.c.h.b16 %v548
        %v895 = vunpack.c.l.b16 %v549
        %v896 = vunpack.c.h.b16 %v549
        %v897 = vunpack.c.l.b16 %v550
        %v898 = vunpack.c.h.b16 %v550
        %v899 = vunpack.c.l.b16 %v551
        %v900 = vunpack.c.h.b16 %v551
        %v901 = vunpack.c.l.b16 %v552
        %v902 = vunpack.c.h.b16 %v552
        %v903 = vunpack.c.l.b16 %v553
        %v904 = vunpack.c.h.b16 %v553
        %v905 = vunpack.c.l.b16 %v554
        %v906 = vunpack.c.h.b16 %v554
        %v907 = vunpack.c.l.b16 %v555
        %v908 = vunpack.c.h.b16 %v555
        %v909 = vunpack.c.l.b16 %v556
        %v910 = vunpack.c.h.b16 %v556
        %v911 = vunpack.c.l.b16 %v557
        %v912 = vunpack.c.h.b16 %v557
        %v913 = vunpack.c.l.b16 %v558
        %v914 = vunpack.c.h.b16 %v558
        %v915 = vunpack.c.l.b16 %v559
        %v916 = vunpack.c.h.b16 %v559
        %v917 = vunpack.c.l.b16 %v560
        %v918 = vunpack.c.h.b16 %v560
        %v919 = vunpack.c.l.b16 %v561
        %v920 = vunpack.c.h.b16 %v561
        %v921 = vunpack.c.l.b16 %v562
        %v922 = vunpack.c.h.b16 %v562
        %v923 = vunpack.c.l.b16 %v563
        %v924 = vunpack.c.h.b16 %v563
        %v925 = vunpack.c.l.b16 %v564
        %v926 = vunpack.c.h.b16 %v564
        %v927 = vunpack.c.l.b16 %v565
        %v928 = vunpack.c.h.b16 %v565
        %v929 = vunpack.c.l.b16 %v566
        %v930 = vunpack.c.h.b16 %v566
        %v931 = vunpack.c.l.b16 %v567
        %v932 = vunpack.c.h.b16 %v567
        %v933 = vunpack.c.l.b16 %v568
        %v934 = vunpack.c.h.b16 %v568
        %v935 = vunpack.c.l.b16 %v569
        %v936 = vunpack.c.h.b16 %v569
        %v937 = vunpack.c.l.b16 %v570
        %v938 = vunpack.c.h.b16 %v570
        %v939 = vunpack.c.l.b16 %v571
        %v940 = vunpack.c.h.b16 %v571
        %v941 = vunpack.c.l.b16 %v572
        %v942 = vunpack.c.h.b16 %v572
        %v943 = vunpack.c.l.b16 %v573
        %v944 = vunpack.c.h.b16 %v573
        %v945 = vunpack.c.l.b16 %v574
        %v946 = vunpack.c.h.b16 %v574
        %v947 = vunpack.c.l.b16 %v575
        %v948 = vunpack.c.h.b16 %v575
        %v949 = vunpack.c.l.b16 %v576
        %v950 = vunpack.c.h.b16 %v576
        %v951 = vunpack.c.l.b16 %v577
        %v952 = vunpack.c.h.b16 %v577
        %v953 = vunpack.c.l.b16 %v578
        %v954 = vunpack.c.h.b16 %v578
        %v955 = vunpack.c.l.b16 %v579
        %v956 = vunpack.c.h.b16 %v579
        %v957 = vunpack.c.l.b16 %v580
        %v958 = vunpack.c.h.b16 %v580
        %v959 = vunpack.c.l.b16 %v581
        %v960 = vunpack.c.h.b16 %v581
        %v961 = vunpack.c.l.b16 %v582
        %v962 = vunpack.c.h.b16 %v582
        %v963 = vunpack.c.l.b16 %v583
        %v964 = vunpack.c.h.b16 %v583
        %v965 = vunpack.c.l.b16 %v584
        %v966 = vunpack.c.h.b16 %v584
        %v967 = vunpack.c.l.b16 %v585
        %v968 = vunpack.c.h.b16 %v585
        %v969 = vunpack.c.l.b16 %v586
        %v970 = vunpack.c.h.b16 %v586
        %v971 = vunpack.c.l.b16 %v587
        %v972 = vunpack.c.h.b16 %v587
        %v973 = vunpack.c.l.b16 %v588
        %v974 = vunpack.c.h.b16 %v588
        %v975 = vunpack.c.l.b16 %v589
        %v976 = vunpack.c.h.b16 %v589
        %v977 = vunpack.c.l.b16 %v590
        %v978 = vunpack.c.h.b16 %v590
        %v979 = vunpack.c.l.b16 %v591
        %v980 = vunpack.c.h.b16 %v591
        %v981 = vunpack.c.l.b16 %v592
        %v982 = vunpack.c.h.b16 %v592
        %v983 = vunpack.c.l.b16 %v593
        %v984 = vunpack.c.h.b16 %v593
        %v985 = vunpack.c.l.b16 %v594
        %v986 = vunpack.c.h.b16 %v594
        %v987 = vunpack.c.l.b16 %v595
        %v988 = vunpack.c.h.b16 %v595
        %v989 = vunpack.c.l.b16 %v596
        %v990 = vunpack.c.h.b16 %v596
        %v991 = vunpack.c.l.b16 %v597
        %v992 = vunpack.c.h.b16 %v597
        %v993 = vunpack.c.l.b16 %v598
        %v994 = vunpack.c.h.b16 %v598
        %v995 = vunpack.c.l.b16 %v599
        %v996 = vunpack.c.h.b16 %v599
        %v997 = vunpack.c.l.b16 %v600
        %v998 = vunpack.c.h.b16 %v600
        %v999 = vunpack.c.l.b16 %v601
        %v1000 = vunpack.c.h.b16 %v601
        %v1001 = vunpack.c.l.b16 %v602
        %v1002 = vunpack.c.h.b16 %v602
        %v1003 = vunpack.c.l.b16 %v603
        %v1004 = vunpack.c.h.b16 %v603
        %v1005 = vunpack.c.l.b16 %v604
        %v1006 = vunpack.c.h.b16 %v604
        %v1007 = vunpack.c.l.b16 %v605
        %v1008 = vunpack.c.h.b16 %v605
        %v1009 = vunpack.c.l.b16 %v606
        %v1010 = vunpack.c.h.b16 %v606
        %v1011 = vunpack.c.l.b16 %v607
        %v1012 = vunpack.c.h.b16 %v607
        %v1013 = vunpack.c.l.b16 %v608
        %v1014 = vunpack.c.h.b16 %v608
        %v1015 = vpack.c.b16 %v763, %v759
        %v1016 = vpack.c.b16 %v764, %v760
        %v1017 = vpack.c.b16 %v765, %v761
        %v1018 = vpack.c.b16 %v766, %v762
        %v1019 = vpack.c.b16 %v771, %v767
        %v1020 = vpack.c.b16 %v772, %v768
        %v1021 = vpack.c.b16 %v773, %v769
        %v1022 = vpack.c.b16 %v774, %v770
        %v1023 = vpack.c.b16 %v779, %v775
        %v1024 = vpack.c.b16 %v780, %v776
        %v1025 = vpack.c.b16 %v781, %v777
        %v1026 = vpack.c.b16 %v782, %v778
        %v1027 = vpack.c.b16 %v787, %v783
        %v1028 = vpack.c.b16 %v788, %v784
        %v1029 = vpack.c.b16 %v789, %v785
        %v1030 = vpack.c.b16 %v790, %v786
        %v1031 = vpack.c.b16 %v795, %v791
        %v1032 = vpack.c.b16 %v796, %v792
        %v1033 = vpack.c.b16 %v797, %v793
        %v1034 = vpack.c.b16 %v798, %v794
        %v1035 = vpack.c.b16 %v803, %v799
        %v1036 = vpack.c.b16 %v804, %v800
        %v1037 = vpack.c.b16 %v805, %v801
        %v1038 = vpack.c.b16 %v806, %v802
        %v1039 = vpack.c.b16 %v811, %v807
        %v1040 = vpack.c.b16 %v812, %v808
        %v1041 = vpack.c.b16 %v813, %v809
        %v1042 = vpack.c.b16 %v814, %v810
        %v1043 = vpack.c.b16 %v819, %v815
        %v1044 = vpack.c.b16 %v820, %v816
        %v1045 = vpack.c.b16 %v821, %v817
        %v1046 = vpack.c.b16 %v822, %v818
        %v1047 = vpack.c.b16 %v827, %v823
        %v1048 = vpack.c.b16 %v828, %v824
        %v1049 = vpack.c.b16 %v829, %v825
        %v1050 = vpack.c.b16 %v830, %v826
        %v1051 = vpack.c.b16 %v835, %v831
        %v1052 = vpack.c.b16 %v836, %v832
        %v1053 = vpack.c.b16 %v837, %v833
        %v1054 = vpack.c.b16 %v838, %v834
        %v1055 = vpack.c.b16 %v843, %v839
        %v1056 = vpack.c.b16 %v844, %v840
        %v1057 = vpack.c.b16 %v845, %v841
        %v1058 = vpack.c.b16 %v846, %v842
        %v1059 = vpack.c.b16 %v851, %v847
        %v1060 = vpack.c.b16 %v852, %v848
        %v1061 = vpack.c.b16 %v853, %v849
        %v1062 = vpack.c.b16 %v854, %v850
        %v1063 = vpack.c.b16 %v859, %v855
        %v1064 = vpack.c.b16 %v860, %v856
        %v1065 = vpack.c.b16 %v861, %v857
        %v1066 = vpack.c.b16 %v862, %v858
        %v1067 = vpack.c.b16 %v867, %v863
        %v1068 = vpack.c.b16 %v868, %v864
        %v1069 = vpack.c.b16 %v869, %v865
        %v1070 = vpack.c.b16 %v870, %v866
        %v1071 = vpack.c.b16 %v875, %v871
        %v1072 = vpack.c.b16 %v876, %v872
        %v1073 = vpack.c.b16 %v877, %v873
        %v1074 = vpack.c.b16 %v878, %v874
        %v1075 = vpack.c.b16 %v883, %v879
        %v1076 = vpack.c.b16 %v884, %v880
        %v1077 = vpack.c.b16 %v885, %v881
        %v1078 = vpack.c.b16 %v886, %v882
        %v1079 = vpack.c.b16 %v891, %v887
        %v1080 = vpack.c.b16 %v892, %v888
        %v1081 = vpack.c.b16 %v893, %v889
        %v1082 = vpack.c.b16 %v894, %v890
        %v1083 = vpack.c.b16 %v899, %v895
        %v1084 = vpack.c.b16 %v900, %v896
        %v1085 = vpack.c.b16 %v901, %v897
        %v1086 = vpack.c.b16 %v902, %v898
        %v1087 = vpack.c.b16 %v907, %v903
        %v1088 = vpack.c.b16 %v908, %v904
        %v1089 = vpack.c.b16 %v909, %v905
        %v1090 = vpack.c.b16 %v910, %v906
        %v1091 = vpack.c.b16 %v915, %v911
        %v1092 = vpack.c.b16 %v916, %v912
        %v1093 = vpack.c.b16 %v917, %v913
        %v1094 = vpack.c.b16 %v918, %v914
        %v1095 = vpack.c.b16 %v923, %v919
        %v1096 = vpack.c.b16 %v924, %v920
        %v1097 = vpack.c.b16 %v925, %v921
        %v1098 = vpack.c.b16 %v926, %v922
        %v1099 = vpack.c.b16 %v931, %v927
        %v1100 = vpack.c.b16 %v932, %v928
        %v1101 = vpack.c.b16 %v933, %v929
        %v1102 = vpack.c.b16 %v934, %v930
        %v1103 = vpack.c.b16 %v939, %v935
        %v1104 = vpack.c.b16 %v940, %v936
        %v1105 = vpack.c.b16 %v941, %v937
        %v1106 = vpack.c.b16 %v942, %v938
        %v1107 = vpack.c.b16 %v947, %v943
        %v1108 = vpack.c.b16 %v948, %v944
        %v1109 = vpack.c.b16 %v949, %v945
        %v1110 = vpack.c.b16 %v950, %v946
        %v1111 = vpack.c.b16 %v955, %v951
        %v1112 = vpack.c.b16 %v956, %v952
        %v1113 = vpack.c.b16 %v957, %v953
        %v1114 = vpack.c.b16 %v958, %v954
        %v1115 = vpack.c.b16 %v963, %v959
        %v1116 = vpack.c.b16 %v964, %v960
        %v1117 = vpack.c.b16 %v965, %v961
        %v1118 = vpack.c.b16 %v966, %v962
        %v1119 = vpack.c.b16 %v971, %v967
        %v1120 = vpack.c.b16 %v972, %v968
        %v1121 = vpack.c.b16 %v973, %v969
        %v1122 = vpack.c.b16 %v974, %v970
        %v1123 = vpack.c.b16 %v979, %v975
        %v1124 = vpack.c.b16 %v980, %v976
        %v1125 = vpack.c.b16 %v981, %v977
        %v1126 = vpack.c.b16 %v982, %v978
        %v1127 = vpack.c.b16 %v987, %v983
        %v1128 = vpack.c.b16 %v988, %v984
        %v1129 = vpack.c.b16 %v989, %v985
        %v1130 = vpack.c.b16 %v990, %v986
        %v1131 = vpack.c.b16 %v995, %v991
        %v1132 = vpack.c.b16 %v996, %v992
        %v1133 = vpack.c.b16 %v997, %v993
        %v1134 = vpack.c.b16 %v998, %v994
        %v1135 = vpack.c.b16 %v1003, %v999
        %v1136 = vpack.c.b16 %v1004, %v1000
        %v1137 = vpack.c.b16 %v1005, %v1001
        %v1138 = vpack.c.b16 %v1006, %v1002
        %v1139 = vpack.c.b16 %v1011, %v1007
        %v1140 = vpack.c.b16 %v1012, %v1008
        %v1141 = vpack.c.b16 %v1013, %v1009
        %v1142 = vpack.c.b16 %v1014, %v1010
        %1271 = vmatprep.subr.bf16.mxu0 %v1016
        %1272 = vmatpush1.bf16.msra.mxu0 %v1015
        %1273 = vmatprep.subr.bf16.mxu0 %v1020
        %1274 = vmatpush1.bf16.msra.mxu0 %v1019
        %1275 = vmatprep.subr.bf16.mxu0 %v1024
        %1276 = vmatpush1.bf16.msra.mxu0 %v1023
        %1277 = vmatprep.subr.bf16.mxu0 %v1028
        %1278 = vmatpush1.bf16.msra.mxu0 %v1027
        %1279 = vmatprep.subr.bf16.mxu0 %v1032
        %1280 = vmatpush1.bf16.msra.mxu0 %v1031
        %1281 = vmatprep.subr.bf16.mxu0 %v1036
        %1282 = vmatpush1.bf16.msra.mxu0 %v1035
        %1283 = vmatprep.subr.bf16.mxu0 %v1040
        %1284 = vmatpush1.bf16.msra.mxu0 %v1039
        %1285 = vmatprep.subr.bf16.mxu0 %v1044
        %1286 = vmatpush1.bf16.msra.mxu0 %v1043
        %1287 = vmatprep.subr.bf16.mxu0 %v1048
        %1288 = vmatpush1.bf16.msra.mxu0 %v1047
        %1289 = vmatprep.subr.bf16.mxu0 %v1052
        %1290 = vmatpush1.bf16.msra.mxu0 %v1051
        %1291 = vmatprep.subr.bf16.mxu0 %v1056
        %1292 = vmatpush1.bf16.msra.mxu0 %v1055
        %1293 = vmatprep.subr.bf16.mxu0 %v1060
        %1294 = vmatpush1.bf16.msra.mxu0 %v1059
        %1295 = vmatprep.subr.bf16.mxu0 %v1064
        %1296 = vmatpush1.bf16.msra.mxu0 %v1063
        %1297 = vmatprep.subr.bf16.mxu0 %v1068
        %1298 = vmatpush1.bf16.msra.mxu0 %v1067
        %1299 = vmatprep.subr.bf16.mxu0 %v1072
        %1300 = vmatpush1.bf16.msra.mxu0 %v1071
        %1301 = vmatprep.subr.bf16.mxu0 %v1076
        %1302 = vmatpush1.bf16.msra.mxu0 %v1075
        %1303 = vmatprep.mubr.bf16.mxu0 %v478
        %1304 = vmatmul.mubr.bf16.gmra.mrb[0].mxu0 %v477
        %v1305 = vpop.f32.mrb[0].mxu0
        %v1306 = vadd.f32 %v614, %v1305
        %v1307 = vpop.f32.mrb[0].mxu0
        %v1308 = vadd.f32 %v618, %v1307
        %v1309 = vpop.f32.mrb[0].mxu0
        %v1310 = vadd.f32 %v614, %v1309
        %v1311 = vpop.f32.mrb[0].mxu0
        %v1312 = vadd.f32 %v618, %v1311
        %1313 = vdwg.mxu0
        %1314 = vmatprep.subr.bf16.mxu0 %v1080
        %1315 = vmatpush1.bf16.msra.mxu0 %v1079
        %1316 = vmatprep.subr.bf16.mxu0 %v1084
        %1317 = vmatpush1.bf16.msra.mxu0 %v1083
        %1318 = vmatprep.subr.bf16.mxu0 %v1088
        %1319 = vmatpush1.bf16.msra.mxu0 %v1087
        %1320 = vmatprep.subr.bf16.mxu0 %v1092
        %1321 = vmatpush1.bf16.msra.mxu0 %v1091
        %1322 = vmatprep.subr.bf16.mxu0 %v1096
        %1323 = vmatpush1.bf16.msra.mxu0 %v1095
        %1324 = vmatprep.subr.bf16.mxu0 %v1100
        %1325 = vmatpush1.bf16.msra.mxu0 %v1099
        %1326 = vmatprep.subr.bf16.mxu0 %v1104
        %1327 = vmatpush1.bf16.msra.mxu0 %v1103
        %1328 = vmatprep.subr.bf16.mxu0 %v1108
        %1329 = vmatpush1.bf16.msra.mxu0 %v1107
        %1330 = vmatprep.subr.bf16.mxu0 %v1112
        %1331 = vmatpush1.bf16.msra.mxu0 %v1111
        %1332 = vmatprep.subr.bf16.mxu0 %v1116
        %1333 = vmatpush1.bf16.msra.mxu0 %v1115
        %1334 = vmatprep.subr.bf16.mxu0 %v1120
        %1335 = vmatpush1.bf16.msra.mxu0 %v1119
        %1336 = vmatprep.subr.bf16.mxu0 %v1124
        %1337 = vmatpush1.bf16.msra.mxu0 %v1123
        %1338 = vmatprep.subr.bf16.mxu0 %v1128
        %1339 = vmatpush1.bf16.msra.mxu0 %v1127
        %1340 = vmatprep.subr.bf16.mxu0 %v1132
        %1341 = vmatpush1.bf16.msra.mxu0 %v1131
        %1342 = vmatprep.subr.bf16.mxu0 %v1136
        %1343 = vmatpush1.bf16.msra.mxu0 %v1135
        %1344 = vmatprep.subr.bf16.mxu0 %v1140
        %1345 = vmatpush1.bf16.msra.mxu0 %v1139
        %1346 = vmatprep.mubr.bf16.mxu0 %v480
        %1347 = vmatmul.mubr.bf16.gmra.mrb[0].mxu0 %v479
        %v1348 = vpop.f32.mrb[0].mxu0
        %v1349 = vadd.f32 %v1306, %v1348
        %v1350 = vpop.f32.mrb[0].mxu0
        %v1351 = vadd.f32 %v1308, %v1350
        %v1352 = vpop.f32.mrb[0].mxu0
        %v1353 = vadd.f32 %v1310, %v1352
        %v1354 = vpop.f32.mrb[0].mxu0
        %v1355 = vadd.f32 %v1312, %v1354
        %1356 = vdwg.mxu0
        %1357 = vmatprep.subr.bf16.mxu0 %v1018
        %1358 = vmatpush1.bf16.msra.mxu0 %v1017
        %1359 = vmatprep.subr.bf16.mxu0 %v1022
        %1360 = vmatpush1.bf16.msra.mxu0 %v1021
        %1361 = vmatprep.subr.bf16.mxu0 %v1026
        %1362 = vmatpush1.bf16.msra.mxu0 %v1025
        %1363 = vmatprep.subr.bf16.mxu0 %v1030
        %1364 = vmatpush1.bf16.msra.mxu0 %v1029
        %1365 = vmatprep.subr.bf16.mxu0 %v1034
        %1366 = vmatpush1.bf16.msra.mxu0 %v1033
        %1367 = vmatprep.subr.bf16.mxu0 %v1038
        %1368 = vmatpush1.bf16.msra.mxu0 %v1037
        %1369 = vmatprep.subr.bf16.mxu0 %v1042
        %1370 = vmatpush1.bf16.msra.mxu0 %v1041
        %1371 = vmatprep.subr.bf16.mxu0 %v1046
        %1372 = vmatpush1.bf16.msra.mxu0 %v1045
        %1373 = vmatprep.subr.bf16.mxu0 %v1050
        %1374 = vmatpush1.bf16.msra.mxu0 %v1049
        %1375 = vmatprep.subr.bf16.mxu0 %v1054
        %1376 = vmatpush1.bf16.msra.mxu0 %v1053
        %1377 = vmatprep.subr.bf16.mxu0 %v1058
        %1378 = vmatpush1.bf16.msra.mxu0 %v1057
        %1379 = vmatprep.subr.bf16.mxu0 %v1062
        %1380 = vmatpush1.bf16.msra.mxu0 %v1061
        %1381 = vmatprep.subr.bf16.mxu0 %v1066
        %1382 = vmatpush1.bf16.msra.mxu0 %v1065
        %1383 = vmatprep.subr.bf16.mxu0 %v1070
        %1384 = vmatpush1.bf16.msra.mxu0 %v1069
        %1385 = vmatprep.subr.bf16.mxu0 %v1074
        %1386 = vmatpush1.bf16.msra.mxu0 %v1073
        %1387 = vmatprep.subr.bf16.mxu0 %v1078
        %1388 = vmatpush1.bf16.msra.mxu0 %v1077
        %1389 = vmatprep.mubr.bf16.mxu0 %v478
        %1390 = vmatmul.mubr.bf16.gmra.mrb[0].mxu0 %v477
        %v1391 = vpop.f32.mrb[0].mxu0
        %v1392 = vadd.f32 %v622, %v1391
        %v1393 = vpop.f32.mrb[0].mxu0
        %v1394 = vadd.f32 %v626, %v1393
        %v1395 = vpop.f32.mrb[0].mxu0
        %v1396 = vadd.f32 %v622, %v1395
        %v1397 = vpop.f32.mrb[0].mxu0
        %v1398 = vadd.f32 %v626, %v1397
        %1399 = vdwg.mxu0
        %1400 = vmatprep.subr.bf16.mxu0 %v1082
        %1401 = vmatpush1.bf16.msra.mxu0 %v1081
        %1402 = vmatprep.subr.bf16.mxu0 %v1086
        %1403 = vmatpush1.bf16.msra.mxu0 %v1085
        %1404 = vmatprep.subr.bf16.mxu0 %v1090
        %1405 = vmatpush1.bf16.msra.mxu0 %v1089
        %1406 = vmatprep.subr.bf16.mxu0 %v1094
        %1407 = vmatpush1.bf16.msra.mxu0 %v1093
        %1408 = vmatprep.subr.bf16.mxu0 %v1098
        %1409 = vmatpush1.bf16.msra.mxu0 %v1097
        %1410 = vmatprep.subr.bf16.mxu0 %v1102
        %1411 = vmatpush1.bf16.msra.mxu0 %v1101
        %1412 = vmatprep.subr.bf16.mxu0 %v1106
        %1413 = vmatpush1.bf16.msra.mxu0 %v1105
        %1414 = vmatprep.subr.bf16.mxu0 %v1110
        %1415 = vmatpush1.bf16.msra.mxu0 %v1109
        %1416 = vmatprep.subr.bf16.mxu0 %v1114
        %1417 = vmatpush1.bf16.msra.mxu0 %v1113
        %1418 = vmatprep.subr.bf16.mxu0 %v1118
        %1419 = vmatpush1.bf16.msra.mxu0 %v1117
        %1420 = vmatprep.subr.bf16.mxu0 %v1122
        %1421 = vmatpush1.bf16.msra.mxu0 %v1121
        %1422 = vmatprep.subr.bf16.mxu0 %v1126
        %1423 = vmatpush1.bf16.msra.mxu0 %v1125
        %1424 = vmatprep.subr.bf16.mxu0 %v1130
        %1425 = vmatpush1.bf16.msra.mxu0 %v1129
        %1426 = vmatprep.subr.bf16.mxu0 %v1134
        %1427 = vmatpush1.bf16.msra.mxu0 %v1133
        %1428 = vmatprep.subr.bf16.mxu0 %v1138
        %1429 = vmatpush1.bf16.msra.mxu0 %v1137
        %1430 = vmatprep.subr.bf16.mxu0 %v1142
        %1431 = vmatpush1.bf16.msra.mxu0 %v1141
        %1432 = vmatprep.mubr.bf16.mxu0 %v480
        %1433 = vmatmul.mubr.bf16.gmra.mrb[0].mxu0 %v479
        %v1434 = vpop.f32.mrb[0].mxu0
        %v1435 = vadd.f32 %v1392, %v1434
        %v1436 = vpop.f32.mrb[0].mxu0
        %v1437 = vadd.f32 %v1394, %v1436
        %v1438 = vpop.f32.mrb[0].mxu0
        %v1439 = vadd.f32 %v1396, %v1438
        %v1440 = vpop.f32.mrb[0].mxu0
        %v1441 = vadd.f32 %v1398, %v1440
        %1442 = vdwg.mxu0
        %v1443 = vmax.f32 %v1349, 0.0
        %v1444 = vmax.f32 %v1351, 0.0
        %v1445 = vmax.f32 %v1435, 0.0
        %v1446 = vmax.f32 %v1437, 0.0
        %v1447 = vmax.f32 %v1353, 0.0
        %v1448 = vmax.f32 %v1355, 0.0
        %v1449 = vmax.f32 %v1439, 0.0
        %v1450 = vmax.f32 %v1441, 0.0
        %v1451 = vpack.c.bf16 %v1447, %v1443
        %v1452 = vpack.c.bf16 %v1448, %v1444
        %v1453 = vpack.c.bf16 %v1449, %v1445
        %v1454 = vpack.c.bf16 %v1450, %v1446
        %v1455 = vld [vmem:[%s5] sm:$0xff]
        %v1456 = vld [vmem:[%s5 + $0x8] sm:$0xff]
        %v1457 = vld [vmem:[%s5 + $0x10] sm:$0xff]
        %v1458 = vld [vmem:[%s5 + $0x18] sm:$0xff]
        %v1459 = vld [vmem:[%s5 + $0x20] sm:$0xff]
        %v1460 = vld [vmem:[%s5 + $0x28] sm:$0xff]
        %v1461 = vld [vmem:[%s5 + $0x30] sm:$0xff]
        %v1462 = vld [vmem:[%s5 + $0x38] sm:$0xff]
        %v1463 = vld [vmem:[%s5 + $0x40] sm:$0xff]
        %v1464 = vld [vmem:[%s5 + $0x48] sm:$0xff]
        %v1465 = vld [vmem:[%s5 + $0x50] sm:$0xff]
        %v1466 = vld [vmem:[%s5 + $0x58] sm:$0xff]
        %v1467 = vld [vmem:[%s5 + $0x60] sm:$0xff]
        %v1468 = vld [vmem:[%s5 + $0x68] sm:$0xff]
        %v1469 = vld [vmem:[%s5 + $0x70] sm:$0xff]
        %v1470 = vld [vmem:[%s5 + $0x78] sm:$0xff]
        %v1471 = vld [vmem:[%s5 + $0x80] sm:$0xff]
        %v1472 = vld [vmem:[%s5 + $0x88] sm:$0xff]
        %v1473 = vld [vmem:[%s5 + $0x90] sm:$0xff]
        %v1474 = vld [vmem:[%s5 + $0x98] sm:$0xff]
        %v1475 = vld [vmem:[%s5 + $0xa0] sm:$0xff]
        %v1476 = vld [vmem:[%s5 + $0xa8] sm:$0xff]
        %v1477 = vld [vmem:[%s5 + $0xb0] sm:$0xff]
        %v1478 = vld [vmem:[%s5 + $0xb8] sm:$0xff]
        %v1479 = vld [vmem:[%s5 + $0xc0] sm:$0xff]
        %v1480 = vld [vmem:[%s5 + $0xc8] sm:$0xff]
        %v1481 = vld [vmem:[%s5 + $0xd0] sm:$0xff]
        %v1482 = vld [vmem:[%s5 + $0xd8] sm:$0xff]
        %v1483 = vld [vmem:[%s5 + $0xe0] sm:$0xff]
        %v1484 = vld [vmem:[%s5 + $0xe8] sm:$0xff]
        %v1485 = vld [vmem:[%s5 + $0xf0] sm:$0xff]
        %v1486 = vld [vmem:[%s5 + $0xf8] sm:$0xff]
        %v1487 = vld [vmem:[%s5 + $0x100] sm:$0xff]
        %v1488 = vld [vmem:[%s5 + $0x108] sm:$0xff]
        %v1489 = vld [vmem:[%s5 + $0x110] sm:$0xff]
        %v1490 = vld [vmem:[%s5 + $0x118] sm:$0xff]
        %v1491 = vld [vmem:[%s5 + $0x120] sm:$0xff]
        %v1492 = vld [vmem:[%s5 + $0x128] sm:$0xff]
        %v1493 = vld [vmem:[%s5 + $0x130] sm:$0xff]
        %v1494 = vld [vmem:[%s5 + $0x138] sm:$0xff]
        %v1495 = vld [vmem:[%s5 + $0x140] sm:$0xff]
        %v1496 = vld [vmem:[%s5 + $0x148] sm:$0xff]
        %v1497 = vld [vmem:[%s5 + $0x150] sm:$0xff]
        %v1498 = vld [vmem:[%s5 + $0x158] sm:$0xff]
        %v1499 = vld [vmem:[%s5 + $0x160] sm:$0xff]
        %v1500 = vld [vmem:[%s5 + $0x168] sm:$0xff]
        %v1501 = vld [vmem:[%s5 + $0x170] sm:$0xff]
        %v1502 = vld [vmem:[%s5 + $0x178] sm:$0xff]
        %v1503 = vld [vmem:[%s5 + $0x180] sm:$0xff]
        %v1504 = vld [vmem:[%s5 + $0x188] sm:$0xff]
        %v1505 = vld [vmem:[%s5 + $0x190] sm:$0xff]
        %v1506 = vld [vmem:[%s5 + $0x198] sm:$0xff]
        %v1507 = vld [vmem:[%s5 + $0x1a0] sm:$0xff]
        %v1508 = vld [vmem:[%s5 + $0x1a8] sm:$0xff]
        %v1509 = vld [vmem:[%s5 + $0x1b0] sm:$0xff]
        %v1510 = vld [vmem:[%s5 + $0x1b8] sm:$0xff]
        %v1511 = vld [vmem:[%s5 + $0x1c0] sm:$0xff]
        %v1512 = vld [vmem:[%s5 + $0x1c8] sm:$0xff]
        %v1513 = vld [vmem:[%s5 + $0x1d0] sm:$0xff]
        %v1514 = vld [vmem:[%s5 + $0x1d8] sm:$0xff]
        %v1515 = vld [vmem:[%s5 + $0x1e0] sm:$0xff]
        %v1516 = vld [vmem:[%s5 + $0x1e8] sm:$0xff]
        %v1517 = vld [vmem:[%s5 + $0x1f0] sm:$0xff]
        %v1518 = vld [vmem:[%s5 + $0x1f8] sm:$0xff]
        %v1519 = vld [vmem:[%s5 + $0x200] sm:$0xff]
        %v1520 = vld [vmem:[%s5 + $0x208] sm:$0xff]
        %v1521 = vld [vmem:[%s5 + $0x210] sm:$0xff]
        %v1522 = vld [vmem:[%s5 + $0x218] sm:$0xff]
        %v1523 = vld [vmem:[%s5 + $0x220] sm:$0xff]
        %v1524 = vld [vmem:[%s5 + $0x228] sm:$0xff]
        %v1525 = vld [vmem:[%s5 + $0x230] sm:$0xff]
        %v1526 = vld [vmem:[%s5 + $0x238] sm:$0xff]
        %v1527 = vld [vmem:[%s5 + $0x240] sm:$0xff]
        %v1528 = vld [vmem:[%s5 + $0x248] sm:$0xff]
        %v1529 = vld [vmem:[%s5 + $0x250] sm:$0xff]
        %v1530 = vld [vmem:[%s5 + $0x258] sm:$0xff]
        %v1531 = vld [vmem:[%s5 + $0x260] sm:$0xff]
        %v1532 = vld [vmem:[%s5 + $0x268] sm:$0xff]
        %v1533 = vld [vmem:[%s5 + $0x270] sm:$0xff]
        %v1534 = vld [vmem:[%s5 + $0x278] sm:$0xff]
        %v1535 = vld [vmem:[%s5 + $0x280] sm:$0xff]
        %v1536 = vld [vmem:[%s5 + $0x288] sm:$0xff]
        %v1537 = vld [vmem:[%s5 + $0x290] sm:$0xff]
        %v1538 = vld [vmem:[%s5 + $0x298] sm:$0xff]
        %v1539 = vld [vmem:[%s5 + $0x2a0] sm:$0xff]
        %v1540 = vld [vmem:[%s5 + $0x2a8] sm:$0xff]
        %v1541 = vld [vmem:[%s5 + $0x2b0] sm:$0xff]
        %v1542 = vld [vmem:[%s5 + $0x2b8] sm:$0xff]
        %v1543 = vld [vmem:[%s5 + $0x2c0] sm:$0xff]
        %v1544 = vld [vmem:[%s5 + $0x2c8] sm:$0xff]
        %v1545 = vld [vmem:[%s5 + $0x2d0] sm:$0xff]
        %v1546 = vld [vmem:[%s5 + $0x2d8] sm:$0xff]
        %v1547 = vld [vmem:[%s5 + $0x2e0] sm:$0xff]
        %v1548 = vld [vmem:[%s5 + $0x2e8] sm:$0xff]
        %v1549 = vld [vmem:[%s5 + $0x2f0] sm:$0xff]
        %v1550 = vld [vmem:[%s5 + $0x2f8] sm:$0xff]
        %v1551 = vld [vmem:[%s5 + $0x300] sm:$0xff]
        %v1552 = vld [vmem:[%s5 + $0x308] sm:$0xff]
        %v1553 = vld [vmem:[%s5 + $0x310] sm:$0xff]
        %v1554 = vld [vmem:[%s5 + $0x318] sm:$0xff]
        %v1555 = vld [vmem:[%s5 + $0x320] sm:$0xff]
        %v1556 = vld [vmem:[%s5 + $0x328] sm:$0xff]
        %v1557 = vld [vmem:[%s5 + $0x330] sm:$0xff]
        %v1558 = vld [vmem:[%s5 + $0x338] sm:$0xff]
        %v1559 = vld [vmem:[%s5 + $0x340] sm:$0xff]
        %v1560 = vld [vmem:[%s5 + $0x348] sm:$0xff]
        %v1561 = vld [vmem:[%s5 + $0x350] sm:$0xff]
        %v1562 = vld [vmem:[%s5 + $0x358] sm:$0xff]
        %v1563 = vld [vmem:[%s5 + $0x360] sm:$0xff]
        %v1564 = vld [vmem:[%s5 + $0x368] sm:$0xff]
        %v1565 = vld [vmem:[%s5 + $0x370] sm:$0xff]
        %v1566 = vld [vmem:[%s5 + $0x378] sm:$0xff]
        %v1567 = vld [vmem:[%s5 + $0x380] sm:$0xff]
        %v1568 = vld [vmem:[%s5 + $0x388] sm:$0xff]
        %v1569 = vld [vmem:[%s5 + $0x390] sm:$0xff]
        %v1570 = vld [vmem:[%s5 + $0x398] sm:$0xff]
        %v1571 = vld [vmem:[%s5 + $0x3a0] sm:$0xff]
        %v1572 = vld [vmem:[%s5 + $0x3a8] sm:$0xff]
        %v1573 = vld [vmem:[%s5 + $0x3b0] sm:$0xff]
        %v1574 = vld [vmem:[%s5 + $0x3b8] sm:$0xff]
        %v1575 = vld [vmem:[%s5 + $0x3c0] sm:$0xff]
        %v1576 = vld [vmem:[%s5 + $0x3c8] sm:$0xff]
        %v1577 = vld [vmem:[%s5 + $0x3d0] sm:$0xff]
        %v1578 = vld [vmem:[%s5 + $0x3d8] sm:$0xff]
        %v1579 = vld [vmem:[%s5 + $0x3e0] sm:$0xff]
        %v1580 = vld [vmem:[%s5 + $0x3e8] sm:$0xff]
        %v1581 = vld [vmem:[%s5 + $0x3f0] sm:$0xff]
        %v1582 = vld [vmem:[%s5 + $0x3f8] sm:$0xff]
        %v1583 = vld [vmem:[%s6] sm:$0xf]
        %v1585 = vlaneseq
        %v1586 = vshrl.u32 %v1585, 7
        %v1587 = vsub.s32 0, %v1586
        %v1588 = vrot.slane %v1583, %v1587
        %v1589 = vlaneseq
        %v1590 = vshrl.u32 %v1589, 7
        %v1591 = vsub.s32 1, %v1590
        %v1592 = vrot.slane %v1583, %v1591
        %v1593 = vlaneseq
        %v1594 = vshrl.u32 %v1593, 7
        %v1595 = vsub.s32 2, %v1594
        %v1596 = vrot.slane %v1583, %v1595
        %v1597 = vlaneseq
        %v1598 = vshrl.u32 %v1597, 7
        %v1599 = vsub.s32 3, %v1598
        %v1600 = vrot.slane %v1583, %v1599
        %v1733 = vunpack.c.l.b16 %v1455
        %v1734 = vunpack.c.h.b16 %v1455
        %v1735 = vunpack.c.l.b16 %v1456
        %v1736 = vunpack.c.h.b16 %v1456
        %v1737 = vunpack.c.l.b16 %v1457
        %v1738 = vunpack.c.h.b16 %v1457
        %v1739 = vunpack.c.l.b16 %v1458
        %v1740 = vunpack.c.h.b16 %v1458
        %v1741 = vunpack.c.l.b16 %v1459
        %v1742 = vunpack.c.h.b16 %v1459
        %v1743 = vunpack.c.l.b16 %v1460
        %v1744 = vunpack.c.h.b16 %v1460
        %v1745 = vunpack.c.l.b16 %v1461
        %v1746 = vunpack.c.h.b16 %v1461
        %v1747 = vunpack.c.l.b16 %v1462
        %v1748 = vunpack.c.h.b16 %v1462
        %v1749 = vunpack.c.l.b16 %v1463
        %v1750 = vunpack.c.h.b16 %v1463
        %v1751 = vunpack.c.l.b16 %v1464
        %v1752 = vunpack.c.h.b16 %v1464
        %v1753 = vunpack.c.l.b16 %v1465
        %v1754 = vunpack.c.h.b16 %v1465
        %v1755 = vunpack.c.l.b16 %v1466
        %v1756 = vunpack.c.h.b16 %v1466
        %v1757 = vunpack.c.l.b16 %v1467
        %v1758 = vunpack.c.h.b16 %v1467
        %v1759 = vunpack.c.l.b16 %v1468
        %v1760 = vunpack.c.h.b16 %v1468
        %v1761 = vunpack.c.l.b16 %v1469
        %v1762 = vunpack.c.h.b16 %v1469
        %v1763 = vunpack.c.l.b16 %v1470
        %v1764 = vunpack.c.h.b16 %v1470
        %v1765 = vunpack.c.l.b16 %v1471
        %v1766 = vunpack.c.h.b16 %v1471
        %v1767 = vunpack.c.l.b16 %v1472
        %v1768 = vunpack.c.h.b16 %v1472
        %v1769 = vunpack.c.l.b16 %v1473
        %v1770 = vunpack.c.h.b16 %v1473
        %v1771 = vunpack.c.l.b16 %v1474
        %v1772 = vunpack.c.h.b16 %v1474
        %v1773 = vunpack.c.l.b16 %v1475
        %v1774 = vunpack.c.h.b16 %v1475
        %v1775 = vunpack.c.l.b16 %v1476
        %v1776 = vunpack.c.h.b16 %v1476
        %v1777 = vunpack.c.l.b16 %v1477
        %v1778 = vunpack.c.h.b16 %v1477
        %v1779 = vunpack.c.l.b16 %v1478
        %v1780 = vunpack.c.h.b16 %v1478
        %v1781 = vunpack.c.l.b16 %v1479
        %v1782 = vunpack.c.h.b16 %v1479
        %v1783 = vunpack.c.l.b16 %v1480
        %v1784 = vunpack.c.h.b16 %v1480
        %v1785 = vunpack.c.l.b16 %v1481
        %v1786 = vunpack.c.h.b16 %v1481
        %v1787 = vunpack.c.l.b16 %v1482
        %v1788 = vunpack.c.h.b16 %v1482
        %v1789 = vunpack.c.l.b16 %v1483
        %v1790 = vunpack.c.h.b16 %v1483
        %v1791 = vunpack.c.l.b16 %v1484
        %v1792 = vunpack.c.h.b16 %v1484
        %v1793 = vunpack.c.l.b16 %v1485
        %v1794 = vunpack.c.h.b16 %v1485
        %v1795 = vunpack.c.l.b16 %v1486
        %v1796 = vunpack.c.h.b16 %v1486
        %v1797 = vunpack.c.l.b16 %v1487
        %v1798 = vunpack.c.h.b16 %v1487
        %v1799 = vunpack.c.l.b16 %v1488
        %v1800 = vunpack.c.h.b16 %v1488
        %v1801 = vunpack.c.l.b16 %v1489
        %v1802 = vunpack.c.h.b16 %v1489
        %v1803 = vunpack.c.l.b16 %v1490
        %v1804 = vunpack.c.h.b16 %v1490
        %v1805 = vunpack.c.l.b16 %v1491
        %v1806 = vunpack.c.h.b16 %v1491
        %v1807 = vunpack.c.l.b16 %v1492
        %v1808 = vunpack.c.h.b16 %v1492
        %v1809 = vunpack.c.l.b16 %v1493
        %v1810 = vunpack.c.h.b16 %v1493
        %v1811 = vunpack.c.l.b16 %v1494
        %v1812 = vunpack.c.h.b16 %v1494
        %v1813 = vunpack.c.l.b16 %v1495
        %v1814 = vunpack.c.h.b16 %v1495
        %v1815 = vunpack.c.l.b16 %v1496
        %v1816 = vunpack.c.h.b16 %v1496
        %v1817 = vunpack.c.l.b16 %v1497
        %v1818 = vunpack.c.h.b16 %v1497
        %v1819 = vunpack.c.l.b16 %v1498
        %v1820 = vunpack.c.h.b16 %v1498
        %v1821 = vunpack.c.l.b16 %v1499
        %v1822 = vunpack.c.h.b16 %v1499
        %v1823 = vunpack.c.l.b16 %v1500
        %v1824 = vunpack.c.h.b16 %v1500
        %v1825 = vunpack.c.l.b16 %v1501
        %v1826 = vunpack.c.h.b16 %v1501
        %v1827 = vunpack.c.l.b16 %v1502
        %v1828 = vunpack.c.h.b16 %v1502
        %v1829 = vunpack.c.l.b16 %v1503
        %v1830 = vunpack.c.h.b16 %v1503
        %v1831 = vunpack.c.l.b16 %v1504
        %v1832 = vunpack.c.h.b16 %v1504
        %v1833 = vunpack.c.l.b16 %v1505
        %v1834 = vunpack.c.h.b16 %v1505
        %v1835 = vunpack.c.l.b16 %v1506
        %v1836 = vunpack.c.h.b16 %v1506
        %v1837 = vunpack.c.l.b16 %v1507
        %v1838 = vunpack.c.h.b16 %v1507
        %v1839 = vunpack.c.l.b16 %v1508
        %v1840 = vunpack.c.h.b16 %v1508
        %v1841 = vunpack.c.l.b16 %v1509
        %v1842 = vunpack.c.h.b16 %v1509
        %v1843 = vunpack.c.l.b16 %v1510
        %v1844 = vunpack.c.h.b16 %v1510
        %v1845 = vunpack.c.l.b16 %v1511
        %v1846 = vunpack.c.h.b16 %v1511
        %v1847 = vunpack.c.l.b16 %v1512
        %v1848 = vunpack.c.h.b16 %v1512
        %v1849 = vunpack.c.l.b16 %v1513
        %v1850 = vunpack.c.h.b16 %v1513
        %v1851 = vunpack.c.l.b16 %v1514
        %v1852 = vunpack.c.h.b16 %v1514
        %v1853 = vunpack.c.l.b16 %v1515
        %v1854 = vunpack.c.h.b16 %v1515
        %v1855 = vunpack.c.l.b16 %v1516
        %v1856 = vunpack.c.h.b16 %v1516
        %v1857 = vunpack.c.l.b16 %v1517
        %v1858 = vunpack.c.h.b16 %v1517
        %v1859 = vunpack.c.l.b16 %v1518
        %v1860 = vunpack.c.h.b16 %v1518
        %v1861 = vunpack.c.l.b16 %v1519
        %v1862 = vunpack.c.h.b16 %v1519
        %v1863 = vunpack.c.l.b16 %v1520
        %v1864 = vunpack.c.h.b16 %v1520
        %v1865 = vunpack.c.l.b16 %v1521
        %v1866 = vunpack.c.h.b16 %v1521
        %v1867 = vunpack.c.l.b16 %v1522
        %v1868 = vunpack.c.h.b16 %v1522
        %v1869 = vunpack.c.l.b16 %v1523
        %v1870 = vunpack.c.h.b16 %v1523
        %v1871 = vunpack.c.l.b16 %v1524
        %v1872 = vunpack.c.h.b16 %v1524
        %v1873 = vunpack.c.l.b16 %v1525
        %v1874 = vunpack.c.h.b16 %v1525
        %v1875 = vunpack.c.l.b16 %v1526
        %v1876 = vunpack.c.h.b16 %v1526
        %v1877 = vunpack.c.l.b16 %v1527
        %v1878 = vunpack.c.h.b16 %v1527
        %v1879 = vunpack.c.l.b16 %v1528
        %v1880 = vunpack.c.h.b16 %v1528
        %v1881 = vunpack.c.l.b16 %v1529
        %v1882 = vunpack.c.h.b16 %v1529
        %v1883 = vunpack.c.l.b16 %v1530
        %v1884 = vunpack.c.h.b16 %v1530
        %v1885 = vunpack.c.l.b16 %v1531
        %v1886 = vunpack.c.h.b16 %v1531
        %v1887 = vunpack.c.l.b16 %v1532
        %v1888 = vunpack.c.h.b16 %v1532
        %v1889 = vunpack.c.l.b16 %v1533
        %v1890 = vunpack.c.h.b16 %v1533
        %v1891 = vunpack.c.l.b16 %v1534
        %v1892 = vunpack.c.h.b16 %v1534
        %v1893 = vunpack.c.l.b16 %v1535
        %v1894 = vunpack.c.h.b16 %v1535
        %v1895 = vunpack.c.l.b16 %v1536
        %v1896 = vunpack.c.h.b16 %v1536
        %v1897 = vunpack.c.l.b16 %v1537
        %v1898 = vunpack.c.h.b16 %v1537
        %v1899 = vunpack.c.l.b16 %v1538
        %v1900 = vunpack.c.h.b16 %v1538
        %v1901 = vunpack.c.l.b16 %v1539
        %v1902 = vunpack.c.h.b16 %v1539
        %v1903 = vunpack.c.l.b16 %v1540
        %v1904 = vunpack.c.h.b16 %v1540
        %v1905 = vunpack.c.l.b16 %v1541
        %v1906 = vunpack.c.h.b16 %v1541
        %v1907 = vunpack.c.l.b16 %v1542
        %v1908 = vunpack.c.h.b16 %v1542
        %v1909 = vunpack.c.l.b16 %v1543
        %v1910 = vunpack.c.h.b16 %v1543
        %v1911 = vunpack.c.l.b16 %v1544
        %v1912 = vunpack.c.h.b16 %v1544
        %v1913 = vunpack.c.l.b16 %v1545
        %v1914 = vunpack.c.h.b16 %v1545
        %v1915 = vunpack.c.l.b16 %v1546
        %v1916 = vunpack.c.h.b16 %v1546
        %v1917 = vunpack.c.l.b16 %v1547
        %v1918 = vunpack.c.h.b16 %v1547
        %v1919 = vunpack.c.l.b16 %v1548
        %v1920 = vunpack.c.h.b16 %v1548
        %v1921 = vunpack.c.l.b16 %v1549
        %v1922 = vunpack.c.h.b16 %v1549
        %v1923 = vunpack.c.l.b16 %v1550
        %v1924 = vunpack.c.h.b16 %v1550
        %v1925 = vunpack.c.l.b16 %v1551
        %v1926 = vunpack.c.h.b16 %v1551
        %v1927 = vunpack.c.l.b16 %v1552
        %v1928 = vunpack.c.h.b16 %v1552
        %v1929 = vunpack.c.l.b16 %v1553
        %v1930 = vunpack.c.h.b16 %v1553
        %v1931 = vunpack.c.l.b16 %v1554
        %v1932 = vunpack.c.h.b16 %v1554
        %v1933 = vunpack.c.l.b16 %v1555
        %v1934 = vunpack.c.h.b16 %v1555
        %v1935 = vunpack.c.l.b16 %v1556
        %v1936 = vunpack.c.h.b16 %v1556
        %v1937 = vunpack.c.l.b16 %v1557
        %v1938 = vunpack.c.h.b16 %v1557
        %v1939 = vunpack.c.l.b16 %v1558
        %v1940 = vunpack.c.h.b16 %v1558
        %v1941 = vunpack.c.l.b16 %v1559
        %v1942 = vunpack.c.h.b16 %v1559
        %v1943 = vunpack.c.l.b16 %v1560
        %v1944 = vunpack.c.h.b16 %v1560
        %v1945 = vunpack.c.l.b16 %v1561
        %v1946 = vunpack.c.h.b16 %v1561
        %v1947 = vunpack.c.l.b16 %v1562
        %v1948 = vunpack.c.h.b16 %v1562
        %v1949 = vunpack.c.l.b16 %v1563
        %v1950 = vunpack.c.h.b16 %v1563
        %v1951 = vunpack.c.l.b16 %v1564
        %v1952 = vunpack.c.h.b16 %v1564
        %v1953 = vunpack.c.l.b16 %v1565
        %v1954 = vunpack.c.h.b16 %v1565
        %v1955 = vunpack.c.l.b16 %v1566
        %v1956 = vunpack.c.h.b16 %v1566
        %v1957 = vunpack.c.l.b16 %v1567
        %v1958 = vunpack.c.h.b16 %v1567
        %v1959 = vunpack.c.l.b16 %v1568
        %v1960 = vunpack.c.h.b16 %v1568
        %v1961 = vunpack.c.l.b16 %v1569
        %v1962 = vunpack.c.h.b16 %v1569
        %v1963 = vunpack.c.l.b16 %v1570
        %v1964 = vunpack.c.h.b16 %v1570
        %v1965 = vunpack.c.l.b16 %v1571
        %v1966 = vunpack.c.h.b16 %v1571
        %v1967 = vunpack.c.l.b16 %v1572
        %v1968 = vunpack.c.h.b16 %v1572
        %v1969 = vunpack.c.l.b16 %v1573
        %v1970 = vunpack.c.h.b16 %v1573
        %v1971 = vunpack.c.l.b16 %v1574
        %v1972 = vunpack.c.h.b16 %v1574
        %v1973 = vunpack.c.l.b16 %v1575
        %v1974 = vunpack.c.h.b16 %v1575
        %v1975 = vunpack.c.l.b16 %v1576
        %v1976 = vunpack.c.h.b16 %v1576
        %v1977 = vunpack.c.l.b16 %v1577
        %v1978 = vunpack.c.h.b16 %v1577
        %v1979 = vunpack.c.l.b16 %v1578
        %v1980 = vunpack.c.h.b16 %v1578
        %v1981 = vunpack.c.l.b16 %v1579
        %v1982 = vunpack.c.h.b16 %v1579
        %v1983 = vunpack.c.l.b16 %v1580
        %v1984 = vunpack.c.h.b16 %v1580
        %v1985 = vunpack.c.l.b16 %v1581
        %v1986 = vunpack.c.h.b16 %v1581
        %v1987 = vunpack.c.l.b16 %v1582
        %v1988 = vunpack.c.h.b16 %v1582
        %v1989 = vpack.c.b16 %v1737, %v1733
        %v1990 = vpack.c.b16 %v1738, %v1734
        %v1991 = vpack.c.b16 %v1739, %v1735
        %v1992 = vpack.c.b16 %v1740, %v1736
        %v1993 = vpack.c.b16 %v1745, %v1741
        %v1994 = vpack.c.b16 %v1746, %v1742
        %v1995 = vpack.c.b16 %v1747, %v1743
        %v1996 = vpack.c.b16 %v1748, %v1744
        %v1997 = vpack.c.b16 %v1753, %v1749
        %v1998 = vpack.c.b16 %v1754, %v1750
        %v1999 = vpack.c.b16 %v1755, %v1751
        %v2000 = vpack.c.b16 %v1756, %v1752
        %v2001 = vpack.c.b16 %v1761, %v1757
        %v2002 = vpack.c.b16 %v1762, %v1758
        %v2003 = vpack.c.b16 %v1763, %v1759
        %v2004 = vpack.c.b16 %v1764, %v1760
        %v2005 = vpack.c.b16 %v1769, %v1765
        %v2006 = vpack.c.b16 %v1770, %v1766
        %v2007 = vpack.c.b16 %v1771, %v1767
        %v2008 = vpack.c.b16 %v1772, %v1768
        %v2009 = vpack.c.b16 %v1777, %v1773
        %v2010 = vpack.c.b16 %v1778, %v1774
        %v2011 = vpack.c.b16 %v1779, %v1775
        %v2012 = vpack.c.b16 %v1780, %v1776
        %v2013 = vpack.c.b16 %v1785, %v1781
        %v2014 = vpack.c.b16 %v1786, %v1782
        %v2015 = vpack.c.b16 %v1787, %v1783
        %v2016 = vpack.c.b16 %v1788, %v1784
        %v2017 = vpack.c.b16 %v1793, %v1789
        %v2018 = vpack.c.b16 %v1794, %v1790
        %v2019 = vpack.c.b16 %v1795, %v1791
        %v2020 = vpack.c.b16 %v1796, %v1792
        %v2021 = vpack.c.b16 %v1801, %v1797
        %v2022 = vpack.c.b16 %v1802, %v1798
        %v2023 = vpack.c.b16 %v1803, %v1799
        %v2024 = vpack.c.b16 %v1804, %v1800
        %v2025 = vpack.c.b16 %v1809, %v1805
        %v2026 = vpack.c.b16 %v1810, %v1806
        %v2027 = vpack.c.b16 %v1811, %v1807
        %v2028 = vpack.c.b16 %v1812, %v1808
        %v2029 = vpack.c.b16 %v1817, %v1813
        %v2030 = vpack.c.b16 %v1818, %v1814
        %v2031 = vpack.c.b16 %v1819, %v1815
        %v2032 = vpack.c.b16 %v1820, %v1816
        %v2033 = vpack.c.b16 %v1825, %v1821
        %v2034 = vpack.c.b16 %v1826, %v1822
        %v2035 = vpack.c.b16 %v1827, %v1823
        %v2036 = vpack.c.b16 %v1828, %v1824
        %v2037 = vpack.c.b16 %v1833, %v1829
        %v2038 = vpack.c.b16 %v1834, %v1830
        %v2039 = vpack.c.b16 %v1835, %v1831
        %v2040 = vpack.c.b16 %v1836, %v1832
        %v2041 = vpack.c.b16 %v1841, %v1837
        %v2042 = vpack.c.b16 %v1842, %v1838
        %v2043 = vpack.c.b16 %v1843, %v1839
        %v2044 = vpack.c.b16 %v1844, %v1840
        %v2045 = vpack.c.b16 %v1849, %v1845
        %v2046 = vpack.c.b16 %v1850, %v1846
        %v2047 = vpack.c.b16 %v1851, %v1847
        %v2048 = vpack.c.b16 %v1852, %v1848
        %v2049 = vpack.c.b16 %v1857, %v1853
        %v2050 = vpack.c.b16 %v1858, %v1854
        %v2051 = vpack.c.b16 %v1859, %v1855
        %v2052 = vpack.c.b16 %v1860, %v1856
        %v2053 = vpack.c.b16 %v1865, %v1861
        %v2054 = vpack.c.b16 %v1866, %v1862
        %v2055 = vpack.c.b16 %v1867, %v1863
        %v2056 = vpack.c.b16 %v1868, %v1864
        %v2057 = vpack.c.b16 %v1873, %v1869
        %v2058 = vpack.c.b16 %v1874, %v1870
        %v2059 = vpack.c.b16 %v1875, %v1871
        %v2060 = vpack.c.b16 %v1876, %v1872
        %v2061 = vpack.c.b16 %v1881, %v1877
        %v2062 = vpack.c.b16 %v1882, %v1878
        %v2063 = vpack.c.b16 %v1883, %v1879
        %v2064 = vpack.c.b16 %v1884, %v1880
        %v2065 = vpack.c.b16 %v1889, %v1885
        %v2066 = vpack.c.b16 %v1890, %v1886
        %v2067 = vpack.c.b16 %v1891, %v1887
        %v2068 = vpack.c.b16 %v1892, %v1888
        %v2069 = vpack.c.b16 %v1897, %v1893
        %v2070 = vpack.c.b16 %v1898, %v1894
        %v2071 = vpack.c.b16 %v1899, %v1895
        %v2072 = vpack.c.b16 %v1900, %v1896
        %v2073 = vpack.c.b16 %v1905, %v1901
        %v2074 = vpack.c.b16 %v1906, %v1902
        %v2075 = vpack.c.b16 %v1907, %v1903
        %v2076 = vpack.c.b16 %v1908, %v1904
        %v2077 = vpack.c.b16 %v1913, %v1909
        %v2078 = vpack.c.b16 %v1914, %v1910
        %v2079 = vpack.c.b16 %v1915, %v1911
        %v2080 = vpack.c.b16 %v1916, %v1912
        %v2081 = vpack.c.b16 %v1921, %v1917
        %v2082 = vpack.c.b16 %v1922, %v1918
        %v2083 = vpack.c.b16 %v1923, %v1919
        %v2084 = vpack.c.b16 %v1924, %v1920
        %v2085 = vpack.c.b16 %v1929, %v1925
        %v2086 = vpack.c.b16 %v1930, %v1926
        %v2087 = vpack.c.b16 %v1931, %v1927
        %v2088 = vpack.c.b16 %v1932, %v1928
        %v2089 = vpack.c.b16 %v1937, %v1933
        %v2090 = vpack.c.b16 %v1938, %v1934
        %v2091 = vpack.c.b16 %v1939, %v1935
        %v2092 = vpack.c.b16 %v1940, %v1936
        %v2093 = vpack.c.b16 %v1945, %v1941
        %v2094 = vpack.c.b16 %v1946, %v1942
        %v2095 = vpack.c.b16 %v1947, %v1943
        %v2096 = vpack.c.b16 %v1948, %v1944
        %v2097 = vpack.c.b16 %v1953, %v1949
        %v2098 = vpack.c.b16 %v1954, %v1950
        %v2099 = vpack.c.b16 %v1955, %v1951
        %v2100 = vpack.c.b16 %v1956, %v1952
        %v2101 = vpack.c.b16 %v1961, %v1957
        %v2102 = vpack.c.b16 %v1962, %v1958
        %v2103 = vpack.c.b16 %v1963, %v1959
        %v2104 = vpack.c.b16 %v1964, %v1960
        %v2105 = vpack.c.b16 %v1969, %v1965
        %v2106 = vpack.c.b16 %v1970, %v1966
        %v2107 = vpack.c.b16 %v1971, %v1967
        %v2108 = vpack.c.b16 %v1972, %v1968
        %v2109 = vpack.c.b16 %v1977, %v1973
        %v2110 = vpack.c.b16 %v1978, %v1974
        %v2111 = vpack.c.b16 %v1979, %v1975
        %v2112 = vpack.c.b16 %v1980, %v1976
        %v2113 = vpack.c.b16 %v1985, %v1981
        %v2114 = vpack.c.b16 %v1986, %v1982
        %v2115 = vpack.c.b16 %v1987, %v1983
        %v2116 = vpack.c.b16 %v1988, %v1984
        %2245 = vmatprep.subr.bf16.mxu0 %v1990
        %2246 = vmatpush1.bf16.msra.mxu0 %v1989
        %2247 = vmatprep.subr.bf16.mxu0 %v1994
        %2248 = vmatpush1.bf16.msra.mxu0 %v1993
        %2249 = vmatprep.subr.bf16.mxu0 %v1998
        %2250 = vmatpush1.bf16.msra.mxu0 %v1997
        %2251 = vmatprep.subr.bf16.mxu0 %v2002
        %2252 = vmatpush1.bf16.msra.mxu0 %v2001
        %2253 = vmatprep.subr.bf16.mxu0 %v2006
        %2254 = vmatpush1.bf16.msra.mxu0 %v2005
        %2255 = vmatprep.subr.bf16.mxu0 %v2010
        %2256 = vmatpush1.bf16.msra.mxu0 %v2009
        %2257 = vmatprep.subr.bf16.mxu0 %v2014
        %2258 = vmatpush1.bf16.msra.mxu0 %v2013
        %2259 = vmatprep.subr.bf16.mxu0 %v2018
        %2260 = vmatpush1.bf16.msra.mxu0 %v2017
        %2261 = vmatprep.subr.bf16.mxu0 %v2022
        %2262 = vmatpush1.bf16.msra.mxu0 %v2021
        %2263 = vmatprep.subr.bf16.mxu0 %v2026
        %2264 = vmatpush1.bf16.msra.mxu0 %v2025
        %2265 = vmatprep.subr.bf16.mxu0 %v2030
        %2266 = vmatpush1.bf16.msra.mxu0 %v2029
        %2267 = vmatprep.subr.bf16.mxu0 %v2034
        %2268 = vmatpush1.bf16.msra.mxu0 %v2033
        %2269 = vmatprep.subr.bf16.mxu0 %v2038
        %2270 = vmatpush1.bf16.msra.mxu0 %v2037
        %2271 = vmatprep.subr.bf16.mxu0 %v2042
        %2272 = vmatpush1.bf16.msra.mxu0 %v2041
        %2273 = vmatprep.subr.bf16.mxu0 %v2046
        %2274 = vmatpush1.bf16.msra.mxu0 %v2045
        %2275 = vmatprep.subr.bf16.mxu0 %v2050
        %2276 = vmatpush1.bf16.msra.mxu0 %v2049
        %2277 = vmatprep.mubr.bf16.mxu0 %v1452
        %2278 = vmatmul.mubr.bf16.gmra.mrb[0].mxu0 %v1451
        %v2279 = vpop.f32.mrb[0].mxu0
        %v2280 = vadd.f32 %v1588, %v2279
        %v2281 = vpop.f32.mrb[0].mxu0
        %v2282 = vadd.f32 %v1592, %v2281
        %v2283 = vpop.f32.mrb[0].mxu0
        %v2284 = vadd.f32 %v1588, %v2283
        %v2285 = vpop.f32.mrb[0].mxu0
        %v2286 = vadd.f32 %v1592, %v2285
        %2287 = vdwg.mxu0
        %2288 = vmatprep.subr.bf16.mxu0 %v2054
        %2289 = vmatpush1.bf16.msra.mxu0 %v2053
        %2290 = vmatprep.subr.bf16.mxu0 %v2058
        %2291 = vmatpush1.bf16.msra.mxu0 %v2057
        %2292 = vmatprep.subr.bf16.mxu0 %v2062
        %2293 = vmatpush1.bf16.msra.mxu0 %v2061
        %2294 = vmatprep.subr.bf16.mxu0 %v2066
        %2295 = vmatpush1.bf16.msra.mxu0 %v2065
        %2296 = vmatprep.subr.bf16.mxu0 %v2070
        %2297 = vmatpush1.bf16.msra.mxu0 %v2069
        %2298 = vmatprep.subr.bf16.mxu0 %v2074
        %2299 = vmatpush1.bf16.msra.mxu0 %v2073
        %2300 = vmatprep.subr.bf16.mxu0 %v2078
        %2301 = vmatpush1.bf16.msra.mxu0 %v2077
        %2302 = vmatprep.subr.bf16.mxu0 %v2082
        %2303 = vmatpush1.bf16.msra.mxu0 %v2081
        %2304 = vmatprep.subr.bf16.mxu0 %v2086
        %2305 = vmatpush1.bf16.msra.mxu0 %v2085
        %2306 = vmatprep.subr.bf16.mxu0 %v2090
        %2307 = vmatpush1.bf16.msra.mxu0 %v2089
        %2308 = vmatprep.subr.bf16.mxu0 %v2094
        %2309 = vmatpush1.bf16.msra.mxu0 %v2093
        %2310 = vmatprep.subr.bf16.mxu0 %v2098
        %2311 = vmatpush1.bf16.msra.mxu0 %v2097
        %2312 = vmatprep.subr.bf16.mxu0 %v2102
        %2313 = vmatpush1.bf16.msra.mxu0 %v2101
        %2314 = vmatprep.subr.bf16.mxu0 %v2106
        %2315 = vmatpush1.bf16.msra.mxu0 %v2105
        %2316 = vmatprep.subr.bf16.mxu0 %v2110
        %2317 = vmatpush1.bf16.msra.mxu0 %v2109
        %2318 = vmatprep.subr.bf16.mxu0 %v2114
        %2319 = vmatpush1.bf16.msra.mxu0 %v2113
        %2320 = vmatprep.mubr.bf16.mxu0 %v1454
        %2321 = vmatmul.mubr.bf16.gmra.mrb[0].mxu0 %v1453
        %v2322 = vpop.f32.mrb[0].mxu0
        %v2323 = vadd.f32 %v2280, %v2322
        %v2324 = vpop.f32.mrb[0].mxu0
        %v2325 = vadd.f32 %v2282, %v2324
        %v2326 = vpop.f32.mrb[0].mxu0
        %v2327 = vadd.f32 %v2284, %v2326
        %v2328 = vpop.f32.mrb[0].mxu0
        %v2329 = vadd.f32 %v2286, %v2328
        %2330 = vdwg.mxu0
        %2331 = vmatprep.subr.bf16.mxu0 %v1992
        %2332 = vmatpush1.bf16.msra.mxu0 %v1991
        %2333 = vmatprep.subr.bf16.mxu0 %v1996
        %2334 = vmatpush1.bf16.msra.mxu0 %v1995
        %2335 = vmatprep.subr.bf16.mxu0 %v2000
        %2336 = vmatpush1.bf16.msra.mxu0 %v1999
        %2337 = vmatprep.subr.bf16.mxu0 %v2004
        %2338 = vmatpush1.bf16.msra.mxu0 %v2003
        %2339 = vmatprep.subr.bf16.mxu0 %v2008
        %2340 = vmatpush1.bf16.msra.mxu0 %v2007
        %2341 = vmatprep.subr.bf16.mxu0 %v2012
        %2342 = vmatpush1.bf16.msra.mxu0 %v2011
        %2343 = vmatprep.subr.bf16.mxu0 %v2016
        %2344 = vmatpush1.bf16.msra.mxu0 %v2015
        %2345 = vmatprep.subr.bf16.mxu0 %v2020
        %2346 = vmatpush1.bf16.msra.mxu0 %v2019
        %2347 = vmatprep.subr.bf16.mxu0 %v2024
        %2348 = vmatpush1.bf16.msra.mxu0 %v2023
        %2349 = vmatprep.subr.bf16.mxu0 %v2028
        %2350 = vmatpush1.bf16.msra.mxu0 %v2027
        %2351 = vmatprep.subr.bf16.mxu0 %v2032
        %2352 = vmatpush1.bf16.msra.mxu0 %v2031
        %2353 = vmatprep.subr.bf16.mxu0 %v2036
        %2354 = vmatpush1.bf16.msra.mxu0 %v2035
        %2355 = vmatprep.subr.bf16.mxu0 %v2040
        %2356 = vmatpush1.bf16.msra.mxu0 %v2039
        %2357 = vmatprep.subr.bf16.mxu0 %v2044
        %2358 = vmatpush1.bf16.msra.mxu0 %v2043
        %2359 = vmatprep.subr.bf16.mxu0 %v2048
        %2360 = vmatpush1.bf16.msra.mxu0 %v2047
        %2361 = vmatprep.subr.bf16.mxu0 %v2052
        %2362 = vmatpush1.bf16.msra.mxu0 %v2051
        %2363 = vmatprep.mubr.bf16.mxu0 %v1452
        %2364 = vmatmul.mubr.bf16.gmra.mrb[0].mxu0 %v1451
        %v2365 = vpop.f32.mrb[0].mxu0
        %v2366 = vadd.f32 %v1596, %v2365
        %v2367 = vpop.f32.mrb[0].mxu0
        %v2368 = vadd.f32 %v1600, %v2367
        %v2369 = vpop.f32.mrb[0].mxu0
        %v2370 = vadd.f32 %v1596, %v2369
        %v2371 = vpop.f32.mrb[0].mxu0
        %v2372 = vadd.f32 %v1600, %v2371
        %2373 = vdwg.mxu0
        %2374 = vmatprep.subr.bf16.mxu0 %v2056
        %2375 = vmatpush1.bf16.msra.mxu0 %v2055
        %2376 = vmatprep.subr.bf16.mxu0 %v2060
        %2377 = vmatpush1.bf16.msra.mxu0 %v2059
        %2378 = vmatprep.subr.bf16.mxu0 %v2064
        %2379 = vmatpush1.bf16.msra.mxu0 %v2063
        %2380 = vmatprep.subr.bf16.mxu0 %v2068
        %2381 = vmatpush1.bf16.msra.mxu0 %v2067
        %2382 = vmatprep.subr.bf16.mxu0 %v2072
        %2383 = vmatpush1.bf16.msra.mxu0 %v2071
        %2384 = vmatprep.subr.bf16.mxu0 %v2076
        %2385 = vmatpush1.bf16.msra.mxu0 %v2075
        %2386 = vmatprep.subr.bf16.mxu0 %v2080
        %2387 = vmatpush1.bf16.msra.mxu0 %v2079
        %2388 = vmatprep.subr.bf16.mxu0 %v2084
        %2389 = vmatpush1.bf16.msra.mxu0 %v2083
        %2390 = vmatprep.subr.bf16.mxu0 %v2088
        %2391 = vmatpush1.bf16.msra.mxu0 %v2087
        %2392 = vmatprep.subr.bf16.mxu0 %v2092
        %2393 = vmatpush1.bf16.msra.mxu0 %v2091
        %2394 = vmatprep.subr.bf16.mxu0 %v2096
        %2395 = vmatpush1.bf16.msra.mxu0 %v2095
        %2396 = vmatprep.subr.bf16.mxu0 %v2100
        %2397 = vmatpush1.bf16.msra.mxu0 %v2099
        %2398 = vmatprep.subr.bf16.mxu0 %v2104
        %2399 = vmatpush1.bf16.msra.mxu0 %v2103
        %2400 = vmatprep.subr.bf16.mxu0 %v2108
        %2401 = vmatpush1.bf16.msra.mxu0 %v2107
        %2402 = vmatprep.subr.bf16.mxu0 %v2112
        %2403 = vmatpush1.bf16.msra.mxu0 %v2111
        %2404 = vmatprep.subr.bf16.mxu0 %v2116
        %2405 = vmatpush1.bf16.msra.mxu0 %v2115
        %2406 = vmatprep.mubr.bf16.mxu0 %v1454
        %2407 = vmatmul.mubr.bf16.gmra.mrb[0].mxu0 %v1453
        %v2408 = vpop.f32.mrb[0].mxu0
        %v2409 = vadd.f32 %v2366, %v2408
        %v2410 = vpop.f32.mrb[0].mxu0
        %v2411 = vadd.f32 %v2368, %v2410
        %v2412 = vpop.f32.mrb[0].mxu0
        %v2413 = vadd.f32 %v2370, %v2412
        %v2414 = vpop.f32.mrb[0].mxu0
        %v2415 = vadd.f32 %v2372, %v2414
        %2416 = vdwg.mxu0
        %2417 = vst [vmem:[%s284] sm:$0xff] %v2323
        %2418 = vst [vmem:[%s284 + $0x8] sm:$0xff] %v2325
        %2419 = vst [vmem:[%s284 + $0x10] sm:$0xff] %v2409
        %2420 = vst [vmem:[%s284 + $0x18] sm:$0xff] %v2411
        %2421 = vst [vmem:[%s284 + $0x20] sm:$0xff] %v2327
        %2422 = vst [vmem:[%s284 + $0x28] sm:$0xff] %v2329
        %2423 = vst [vmem:[%s284 + $0x30] sm:$0xff] %v2413
        %2424 = vst [vmem:[%s284 + $0x38] sm:$0xff] %v2415
        %s2425 = sand.u32 %s181, 1
        %s2426 = scalar_lea.sflag [#allocation3], %s2425
        %s2427 = sand.u32 %s181, 1
        %s2428 = smul.addr %s2427, 64
        %s2429 = scalar_lea.vmem [#allocation2], %s2428
        // Predicated region
        $region49: #{_lambda_.1} parent=47 // pred_check
          %p2430 = pneg %p191
        $region50: #{_lambda_.1} parent=47 // pred_check_branch
          %2432 = sbr.rel (%p2430) target = $region52
        $region51: #{_lambda_.1} parent=47 // pred_region
          %s2433 = smul.u32 2, %s21
          %s2434 = ssub.s32 3, %s2433
          %p2435 = scmp.lt.s32.totalorder %s2434, 2
          %s2436 = scalar_select %p2435, %s2434, 2
          %s2437 = smul.u32 128, %s2436
          %s2438 = smul.u32 %s2437, 4
          %s2440 = ssub.s32 1024, %s2438
          %2441 = vsyncadd %s2426, %s2440
          %p2442 = scmp.ne.s32.totalorder 0, %s2438
          %s2443 = smul.addr %s2433, 4
          %s2444 = smul.addr %s2443, 128
          %s2445 = scalar_lea.hbm %s7, %s2444
          %s2446 = smul.u32 32, %s2436
          %s2447 = sshll.u32 %s2429, 4
          %s2448 = int_to_ptr.vmem [resolvable:$true] %s2447
          %s2449 = sshll.u32 %s2446, 4
          %2453 = dma.vmem_to_hbm [thread:$0]  (%p2442), %s2448, %s2449, %s2445, %s2426, 512, 512, 32
        $region52: #{_lambda_.1} parent=47 // pred_fallthru
          _
      $region48: #{_lambda_.1} parent=5 // pred_fallthru
        _
      %p2454 = scmp.le.s32.totalorder 2, %s16
      // Predicated region
      $region53: #{_lambda_.1} parent=5 // pred_check
        %p2455 = pneg %p2454
      $region54: #{_lambda_.1} parent=5 // pred_check_branch
        %2457 = sbr.rel (%p2455) target = $region56
      $region55: #{_lambda_.1} parent=5 // pred_region
        %s2458 = ssub.s32 %s16, 2
        // Predicated region
        $region57: #{_lambda_.1} parent=55 // pred_check
          %p2459 = pneg %p197
        $region58: #{_lambda_.1} parent=55 // pred_check_branch
          %2461 = sbr.rel (%p2459) target = $region60
        $region59: #{_lambda_.1} parent=55 // pred_region
          %s2462 = sand.u32 %s182, 1
          %s2463 = scalar_lea.sflag [#allocation3], %s2462
          %s2464 = sand.u32 %s182, 1
          %s2465 = smul.addr %s2464, 64
          %s2466 = scalar_lea.vmem [#allocation2], %s2465
          %2467 = dma.done %s2463, 1024
        $region60: #{_lambda_.1} parent=55 // pred_fallthru
          _
      $region56: #{_lambda_.1} parent=5 // pred_fallthru
        _
    $region6: #{_lambda_.1} parent=1 // loop_footer
      %s20 = sadd.s32 1, %s16
    $region7: #{_lambda_.1} parent=1 // loop_footer_branch
      %15 = sbr.rel target = $region3
    $region8: #{_lambda_.1} parent=1 // loop_exit
      _
    %2468 = vsyncpa [#allocation3], 1
    %s2469 = scalar_lea.sflag [#allocation3], 1
    %2470 = vsyncpa %s2469, 1

</llo_original>
